<compile_context>
chip_gen: v7x
topology: tpu7x:2x2x1
jax: 0.10.0
libtpu: 0.0.40
codegen_flags: <defaults>
</compile_context>

<pallas_src>
import math

import jax
import jax.numpy as jnp
from jax.experimental import pallas as pl
from jax.experimental.pallas import tpu as pltpu

# ----------------------------- configuration --------------------------------
B = 2                  # batch
NUM_CLASSES = 3
NUM_QUERIES = 8        # Q
HIDDEN = 32            # d_model (GroupNorm(32, HIDDEN) -> group size 1)
NUM_DEC_LAYERS = 2     # decoder levels L
NUM_FEATURE_LEVELS = 2
GROUP_NUM = 11
BACKBONE_CHANNELS = (16, 32)
FEAT_HW = ((8, 8), (4, 4))
IMG_SHAPE = (B, 3, 32, 32)   # images in PyTorch NCHW convention

LANES = 128

# --- input_proj geometry (row order: all lvl-0 rows batch-major, then lvl-1) ---
HW0 = FEAT_HW[0][0] * FEAT_HW[0][1]        # 64
HW1 = FEAT_HW[1][0] * FEAT_HW[1][1]        # 16
C0, C1 = BACKBONE_CHANNELS                  # 16, 32
LVL0_ROWS = B * HW0                         # 128
LVL1_ROWS = B * HW1                         # 32
IP_ROWS = LVL0_ROWS + LVL1_ROWS             # 160
W_IP_ROWS = 64                              # packed conv-weight slab rows
GN_ROWS = 16                                # gamma rows [0:8) + beta rows [8:16)
# GroupNorm segments (one per (batch, level)): (row_start, row_end, level)
IP_SEGMENTS = tuple((bb * HW0, (bb + 1) * HW0, 0) for bb in range(B)) + tuple(
    (LVL0_ROWS + bb * HW1, LVL0_ROWS + (bb + 1) * HW1, 1) for bb in range(B))
N_SEG = len(IP_SEGMENTS)                    # 4 (must be <= 8)

# --- head output-slab lane layout (final positions) ---
O_COORD = 0                  # bbox sigmoid outputs      [0, 6)
O_CLS = 6                    # class logits              [6, 9)
O_DREG = O_CLS + NUM_CLASSES # depth regression          [9, 11)
O_ANG = O_DREG + 2           # angle logits              [11, 35)
O_DGEO = O_ANG + 24          # geometric depth           [35, 36)
O_TOTAL = O_DGEO + 1         # 36

# --- head hidden-column blocks (stage-intermediate lanes) ---
H_B1 = 32                    # bbox  MLP hidden-1 columns (stage 1)
H_D1 = 64                    # depth MLP hidden-1 columns (stage 1)
H_A1 = 96                    # angle MLP hidden-1 columns (stage 1)
H_B2 = 64                    # bbox  MLP hidden-2 columns (stage 2)

# --- head aux-operand lanes ---
AUX_LANES = 8                # [inv_sig(ref_x), inv_sig(ref_y), size3d_h, img_h, fx, 0, 0, 0]


# ----------------------------- Pallas kernels --------------------------------
def input_proj_kernel(x0_ref, x1_ref, w_ref, gn_ref, a_ref, s_ref, o_ref):
    """Fused 1x1 conv (both levels) + GroupNorm(32, 32), all batches, one shot.

    HIDDEN == 32 with 32 groups -> each group holds exactly one channel, so
    GroupNorm reduces over the spatial rows of each (batch, level) segment.
    Segment means / variances are computed with small MXU dots against a
    constant averaging matrix A (n_seg x rows) and broadcast back with a
    constant selector S (rows x n_seg), keeping the epilogue off the XLU.
    Conv bias is omitted: it cancels exactly under the GroupNorm mean.
    """
    w = w_ref[...]                                              # (64, 128) bf16
    y0 = jnp.dot(x0_ref[...].astype(jnp.bfloat16), w[0:C0],
                 preferred_element_type=jnp.float32)            # (128, 128)
    y1 = jnp.dot(x1_ref[...].astype(jnp.bfloat16), w[32:32 + C1],
                 preferred_element_type=jnp.float32)            # (32, 128)
    y = jnp.concatenate([y0, y1], axis=0)                       # (160, 128) f32

    A = a_ref[...]                                              # (8, 160) f32
    S = s_ref[...]                                              # (160, 8) f32
    gn = gn_ref[...]                                            # (16, 128) f32

    mu_s = jnp.dot(A, y, preferred_element_type=jnp.float32)    # per-segment mean (8,128)
    d = y - jnp.dot(S, mu_s, preferred_element_type=jnp.float32)
    var_s = jnp.dot(A, d * d, preferred_element_type=jnp.float32)   # two-pass variance
    scale_s = gn[0:8] * jax.lax.rsqrt(var_s + 1e-5)              # gamma / std per segment
    o_ref[...] = (d * jnp.dot(S, scale_s, preferred_element_type=jnp.float32)
                  + jnp.dot(S, gn[8:16], preferred_element_type=jnp.float32))


def input_proj_call(x0, x1, w_ip, gn_ip, seg_avg, seg_bcast):
    return pl.pallas_call(
        input_proj_kernel,
        out_shape=jax.ShapeDtypeStruct((IP_ROWS, LANES), jnp.float32),
        grid=(1,),
        in_specs=[
            pl.BlockSpec((LVL0_ROWS, C0), lambda i: (0, 0)),
            pl.BlockSpec((LVL1_ROWS, C1), lambda i: (0, 0)),
            pl.BlockSpec((W_IP_ROWS, LANES), lambda i: (0, 0)),
            pl.BlockSpec((GN_ROWS, LANES), lambda i: (0, 0)),
            pl.BlockSpec((8, IP_ROWS), lambda i: (0, 0)),
            pl.BlockSpec((IP_ROWS, 8), lambda i: (0, 0)),
        ],
        out_specs=pl.BlockSpec((IP_ROWS, LANES), lambda i: (0, 0)),
        compiler_params=pltpu.CompilerParams(dimension_semantics=("arbitrary",)),
    )(x0, x1, w_ip, gn_ip, seg_avg, seg_bcast)


def head_kernel(hs_ref, aux_ref, w_ref, b_ref, o_ref):
    """Fused MonoDETR prediction heads for ALL decoder layers in one shot.

    hs  : (R, 32)  decoder hidden states, R = L*B*Q
    aux : (R, 8)   [inv_sigmoid(ref_x), inv_sigmoid(ref_y), size3d_h, img_h, fx, 0,0,0]
    w   : (384,128) bf16: W1 rows [0:128) (cls->[6:9), bbox1->[32:64), depth1->[64:96),
                          angle1->[96:128)); W2 rows [128:256) (bbox2->[64:96),
                          depth-out->[9:11), angle-out->[11:35)); W3 rows [256:384)
                          (bbox-out->[0:6)).
    out : (R, 128) [coord(6) | cls(3) | dreg(2) | ang(24) | dgeo(1) | 0-pad]
          assembled with lane-mask selects -> single unmasked 128-lane store.
    """
    x = hs_ref[...]                                             # (R, 32) f32
    aux = aux_ref[...]                                          # (R, 8)  f32
    w = w_ref[...]                                              # (384, 128) bf16
    b = b_ref[...]                                              # (8, 128) f32

    def mm(a, ws):
        return jnp.dot(a, ws, preferred_element_type=jnp.float32)

    # stage 1: first layers of bbox/depth/angle MLPs + class linear (one dot)
    out1 = mm(x.astype(jnp.bfloat16), w[0:HIDDEN]) + b[0:1]
    z1 = jnp.maximum(out1, 0.0)          # relu; relu'd cls lanes hit zero W2 rows

    # stage 2: second layers -> bbox hidden-2, depth out, angle out
    out2 = mm(z1.astype(jnp.bfloat16), w[LANES:2 * LANES]) + b[1:2]
    z2 = jnp.maximum(out2, 0.0)

    # stage 3: bbox final layer -> logits at lanes [0:6)
    out3 = mm(z2.astype(jnp.bfloat16), w[2 * LANES:3 * LANES]) + b[2:3]

    lane = jax.lax.broadcasted_iota(jnp.int32, out3.shape, 1)
    # tmp[..., :2] += inverse_sigmoid(reference)  (reference is 2-d in this config)
    ref_add = jnp.where(lane == 0, aux[:, 0:1],
                        jnp.where(lane == 1, aux[:, 1:2], 0.0))
    coord_full = jax.nn.sigmoid(out3 + ref_add)                 # lanes [0:6) meaningful

    # geometric depth: size3d[..., 0] / clamp(bh_norm * img_h, 1) * fx  (exact divide)
    size3d_h = aux[:, 2:3]
    img_h = aux[:, 3:4]
    calib_fx = aux[:, 4:5]
    bh = jnp.maximum((coord_full[:, 4:5] + coord_full[:, 5:6]) * img_h, 1.0)
    dgeo = size3d_h / bh * calib_fx                             # (R, 1)

    o_ref[...] = jnp.where(lane < O_CLS, coord_full,
                 jnp.where(lane < O_DREG, out1,
                 jnp.where(lane < O_DGEO, out2,
                 jnp.where(lane < O_TOTAL, dgeo, 0.0))))


def head_call(hs_flat, aux, w_head, b_head):
    rows = hs_flat.shape[0]
    return pl.pallas_call(
        head_kernel,
        out_shape=jax.ShapeDtypeStruct((rows, LANES), jnp.float32),
        grid=(1,),
        in_specs=[
            pl.BlockSpec((rows, HIDDEN), lambda i: (0, 0)),
            pl.BlockSpec((rows, AUX_LANES), lambda i: (0, 0)),
            pl.BlockSpec((3 * LANES, LANES), lambda i: (0, 0)),
            pl.BlockSpec((8, LANES), lambda i: (0, 0)),
        ],
        out_specs=pl.BlockSpec((rows, LANES), lambda i: (0, 0)),
        compiler_params=pltpu.CompilerParams(dimension_semantics=("arbitrary",)),
    )(hs_flat, aux, w_head, b_head)


# ------------------- init-time weight packing (runs ONCE, outside jit) --------
def pack_params(p):
    # --- input_proj: conv weights (bias dropped: cancels under GN mean) ---
    w = jnp.zeros((W_IP_ROWS, LANES), jnp.float32)
    w = w.at[0:C0, 0:HIDDEN].set(p["input_proj"][0]["w"])
    w = w.at[32:32 + C1, 0:HIDDEN].set(p["input_proj"][1]["w"])

    gn = jnp.zeros((GN_ROWS, LANES), jnp.float32)
    A = jnp.zeros((8, IP_ROWS), jnp.float32)
    S = jnp.zeros((IP_ROWS, 8), jnp.float32)
    for s, (lo, hi, lvl) in enumerate(IP_SEGMENTS):
        gn = gn.at[s, 0:HIDDEN].set(p["input_proj"][lvl]["gamma"][0])
        gn = gn.at[8 + s, 0:HIDDEN].set(p["input_proj"][lvl]["beta"][0])
        A = A.at[s, lo:hi].set(1.0 / (hi - lo))
        S = S.at[lo:hi, s].set(1.0)

    # --- head: column-aligned weight / bias slabs ---
    D = HIDDEN
    w1 = jnp.zeros((LANES, LANES), jnp.float32)
    w1 = w1.at[0:D, O_CLS:O_CLS + NUM_CLASSES].set(p["wc"])
    w1 = w1.at[0:D, H_B1:H_B1 + D].set(p["wb1"])
    w1 = w1.at[0:D, H_D1:H_D1 + D].set(p["wd1"])
    w1 = w1.at[0:D, H_A1:H_A1 + D].set(p["wa1"])

    w2 = jnp.zeros((LANES, LANES), jnp.float32)
    w2 = w2.at[H_B1:H_B1 + D, H_B2:H_B2 + D].set(p["wb2"])
    w2 = w2.at[H_D1:H_D1 + D, O_DREG:O_DREG + 2].set(p["wd2"])
    w2 = w2.at[H_A1:H_A1 + D, O_ANG:O_ANG + 24].set(p["wa2"])

    w3 = jnp.zeros((LANES, LANES), jnp.float32)
    w3 = w3.at[H_B2:H_B2 + D, O_COORD:O_COORD + 6].set(p["wb3"])

    w_head = jnp.concatenate([w1, w2, w3], axis=0).astype(jnp.bfloat16)

    bh = jnp.zeros((8, LANES), jnp.float32)
    bh = bh.at[0, O_CLS:O_CLS + NUM_CLASSES].set(p["bc"][0])
    bh = bh.at[0, H_B1:H_B1 + D].set(p["bb1"][0])
    bh = bh.at[0, H_D1:H_D1 + D].set(p["bd1"][0])
    bh = bh.at[0, H_A1:H_A1 + D].set(p["ba1"][0])
    bh = bh.at[1, H_B2:H_B2 + D].set(p["bb2"][0])
    bh = bh.at[1, O_DREG:O_DREG + 2].set(p["bd2"][0])
    bh = bh.at[1, O_ANG:O_ANG + 24].set(p["ba2"][0])
    bh = bh.at[2, O_COORD:O_COORD + 6].set(p["bb3"][0])

    return dict(
        w_ip=w.astype(jnp.bfloat16), gn_ip=gn, seg_avg=A, seg_bcast=S,
        w_head=w_head, b_head=bh,
        bb_proj0=p["bb_proj0"], bb_proj1=p["bb_proj1"],
        query_embed=p["query_embed"],
    )


# ----------------------------- plain-JAX glue ---------------------------------
def inverse_sigmoid(x, eps=1e-5):
    x = jnp.clip(x, 0.0, 1.0)
    x1 = jnp.maximum(x, eps)
    x2 = jnp.maximum(1.0 - x, eps)
    return jnp.log(x1 / x2)


def grid_sample_bilinear_1ch(img, grid):
    """functional.grid_sample(img[:,None], grid[:,:,None], bilinear, align_corners=True)."""
    Bb, H, W = img.shape
    x = (grid[..., 0] + 1.0) * 0.5 * (W - 1)
    y = (grid[..., 1] + 1.0) * 0.5 * (H - 1)
    x0f = jnp.floor(x)
    y0f = jnp.floor(y)
    x0 = jnp.clip(x0f, 0, W - 1).astype(jnp.int32)
    x1 = jnp.clip(x0f + 1, 0, W - 1).astype(jnp.int32)
    y0 = jnp.clip(y0f, 0, H - 1).astype(jnp.int32)
    y1 = jnp.clip(y0f + 1, 0, H - 1).astype(jnp.int32)
    wx = x - x0f
    wy = y - y0f
    flat = img.reshape(Bb, H * W)

    def gather(yy, xx):
        return jnp.take_along_axis(flat, yy * W + xx, axis=1)

    v00 = gather(y0, x0)
    v01 = gather(y0, x1)
    v10 = gather(y1, x0)
    v11 = gather(y1, x1)
    return (v00 * (1 - wx) * (1 - wy) + v01 * wx * (1 - wy)
            + v10 * (1 - wx) * wy + v11 * wx * wy)
    # TODO(synk): data-dependent gather kept in plain JAX (tiny; no clean static BlockSpec)


def backbone_stub(packed, images):
    """Deterministic backbone stub: pooled images -> per-level NHWC features."""
    feats = []
    x = jnp.transpose(images, (0, 2, 3, 1))  # NCHW -> NHWC
    projs = (packed["bb_proj0"], packed["bb_proj1"])
    for (h, w), proj in zip(FEAT_HW, projs):
        H0, W0 = x.shape[1], x.shape[2]
        pooled = x.reshape(B, h, H0 // h, w, W0 // w, 3).mean(axis=(2, 4))  # (B,h,w,3)
        feats.append(jnp.tanh(pooled @ proj))                               # (B,h,w,Cin)
        # TODO(synk): sine positional embedding / valid masks of the real backbone stubbed
    return feats


def depth_predictor_stub(srcs):
    """Deterministic depth-predictor stub derived from the projected srcs."""
    h1, w1 = FEAT_HW[1]
    s1 = srcs[1].reshape(B, h1, w1, HIDDEN)
    pred_depth_map_logits = jnp.transpose(s1, (0, 3, 1, 2))[:, :9]           # (B,9,h1,w1)
    weighted_depth = 1.0 + 59.0 * jax.nn.sigmoid(s1.mean(axis=-1))           # (B,h1,w1)
    return pred_depth_map_logits, None, weighted_depth, None


def transformer_stub(srcs, query_embeds):
    """Deterministic depth-aware-transformer stub producing decoder outputs."""
    pooled = sum(s.mean(axis=1) for s in srcs) / len(srcs)                   # (B, D)
    tgt = query_embeds[:, HIDDEN:]                                           # (Q, D)
    ref_pt = jax.nn.sigmoid(query_embeds[:, :2])                             # (Q, 2)
    hs0 = jnp.tanh(tgt[None, :, :] + pooled[:, None, :])                     # (B,Q,D)
    hs = jnp.stack([hs0 * (0.5 + 0.5 * l) for l in range(NUM_DEC_LAYERS)])   # (L,B,Q,D)
    init_reference = jnp.broadcast_to(ref_pt[None], (B, NUM_QUERIES, 2))
    inter_references = jax.nn.sigmoid(hs[..., :2])                           # (L,B,Q,2)
    inter_references_dim = jax.nn.sigmoid(hs[..., 2:5]) * 3.0                # (L,B,Q,3)
    return hs, init_reference, inter_references, inter_references_dim, None, None


# ----------------------------- parameters -------------------------------------
def init_params(key):
    ks = iter(jax.random.split(key, 64))

    def w(shape, scale=0.1):
        return (scale * jax.random.normal(next(ks), shape)).astype(jnp.float32)

    z = lambda shape: jnp.zeros(shape, jnp.float32)
    o = lambda shape: jnp.ones(shape, jnp.float32)

    p = {}
    # input_proj: per backbone level  Conv2d(Cin, HIDDEN, 1) + GroupNorm(32, HIDDEN)
    # (conv bias initialized to 0 per the reference; it cancels under GN anyway)
    p["input_proj"] = [
        dict(w=w((cin, HIDDEN)), b=z((1, HIDDEN)), gamma=o((1, HIDDEN)), beta=z((1, HIDDEN)))
        for cin in BACKBONE_CHANNELS
    ]
    # class_embed (bias = -log((1-p)/p), p=0.01)
    bias_value = -math.log((1 - 0.01) / 0.01)
    p["wc"] = w((HIDDEN, NUM_CLASSES))
    p["bc"] = jnp.full((1, NUM_CLASSES), bias_value, jnp.float32)
    # bbox_embed MLP (3 layers), last-layer bias[2:] = -2.0
    p["wb1"], p["bb1"] = w((HIDDEN, HIDDEN)), z((1, HIDDEN))
    p["wb2"], p["bb2"] = w((HIDDEN, HIDDEN)), z((1, HIDDEN))
    p["wb3"] = w((HIDDEN, 6))
    p["bb3"] = jnp.zeros((6,), jnp.float32).at[2:].set(-2.0)[None, :]
    # depth_embed MLP (2 layers)
    p["wd1"], p["bd1"] = w((HIDDEN, HIDDEN)), z((1, HIDDEN))
    p["wd2"], p["bd2"] = w((HIDDEN, 2)), z((1, 2))
    # angle_embed MLP (2 layers)
    p["wa1"], p["ba1"] = w((HIDDEN, HIDDEN)), z((1, HIDDEN))
    p["wa2"], p["ba2"] = w((HIDDEN, 24)), z((1, 24))
    # query_embed (num_queries * group_num, 2*hidden); eval uses first num_queries rows
    p["query_embed"] = w((NUM_QUERIES * GROUP_NUM, HIDDEN * 2), scale=1.0)
    # backbone stub channel projections
    p["bb_proj0"] = w((3, BACKBONE_CHANNELS[0]), scale=0.5)
    p["bb_proj1"] = w((3, BACKBONE_CHANNELS[1]), scale=0.5)
    return p


# ----------------------------- MonoDETR forward (jitted) ----------------------
def monodetr_forward(packed, images, calibs, img_sizes):
    feats = backbone_stub(packed, images)

    # --- fused input projection (1x1 conv + GroupNorm), both levels, one Pallas call ---
    x0 = feats[0].reshape(LVL0_ROWS, C0)                          # (128, 16) dense
    x1 = feats[1].reshape(LVL1_ROWS, C1)                          # (32, 32) dense
    proj = input_proj_call(x0, x1, packed["w_ip"], packed["gn_ip"],
                           packed["seg_avg"], packed["seg_bcast"])  # (160, 128)
    src0 = proj[:LVL0_ROWS, :HIDDEN].reshape(B, HW0, HIDDEN)
    src1 = proj[LVL0_ROWS:, :HIDDEN].reshape(B, HW1, HIDDEN)
    srcs = [src0, src1]

    # eval mode: query_embeds = weight[:num_queries]
    query_embeds = packed["query_embed"][:NUM_QUERIES]

    pred_depth_map_logits, _dpe, weighted_depth, _dpe_ip = depth_predictor_stub(srcs)
    hs, init_reference, inter_references, inter_references_dim, _, _ = transformer_stub(
        srcs, query_embeds)

    L, Q = hs.shape[0], NUM_QUERIES
    R = L * B * Q

    # per-level reference (level 0 uses init_reference) in inverse-sigmoid space
    refs = jnp.concatenate([init_reference[None], inter_references[:-1]], axis=0)  # (L,B,Q,2)
    ref_is = inverse_sigmoid(refs)
    # PyTorch uses size3d[:, :, 0], img_sizes[:, :1] and calibs[:, 0, 0] literally:
    size3d_h = inter_references_dim[..., 0:1]                                       # (L,B,Q,1)
    img_h = jnp.broadcast_to(img_sizes[:, 0][None, :, None, None], (L, B, Q, 1))
    calib_fx = jnp.broadcast_to(calibs[:, 0, 0][None, :, None, None], (L, B, Q, 1))

    hs_flat = hs.reshape(R, HIDDEN)
    aux = jnp.concatenate(
        [ref_is, size3d_h, img_h.astype(jnp.float32), calib_fx.astype(jnp.float32),
         jnp.zeros((L, B, Q, AUX_LANES - 5), jnp.float32)], axis=-1).reshape(R, AUX_LANES)

    out_slab = head_call(hs_flat, aux, packed["w_head"], packed["b_head"])          # (R, 128)

    outputs_coord = out_slab[:, O_COORD:O_COORD + 6].reshape(L, B, Q, 6)
    outputs_class = out_slab[:, O_CLS:O_CLS + NUM_CLASSES].reshape(L, B, Q, NUM_CLASSES)
    depth_reg = out_slab[:, O_DREG:O_DREG + 2].reshape(L, B, Q, 2)
    outputs_angle = out_slab[:, O_ANG:O_ANG + 24].reshape(L, B, Q, 24)
    depth_geo = out_slab[:, O_DGEO:O_DGEO + 1].reshape(L, B, Q)
    outputs_3d_dim = inter_references_dim                                           # (L,B,Q,3)

    # depth average via bilinear sampling of the weighted depth map (glue)
    depths = []
    for lvl in range(L):
        center3d = (outputs_coord[lvl, ..., :2] - 0.5) * 2.0                        # (B,Q,2)
        depth_map = grid_sample_bilinear_1ch(weighted_depth, center3d)              # (B,Q)
        d0 = (1.0 / (jax.nn.sigmoid(depth_reg[lvl, ..., 0:1]) + 1e-6) - 1.0
              + depth_geo[lvl][..., None] + depth_map[..., None]) / 3.0
        depths.append(jnp.concatenate([d0, depth_reg[lvl, ..., 1:2]], axis=-1))
    outputs_depth = jnp.stack(depths)

    out = {
        "scores": outputs_class[-1],
        "boxes_3d": outputs_coord[-1],
        "size_3d": outputs_3d_dim[-1],
        "depth": outputs_depth[-1],
        "heading_angle": outputs_angle[-1],
        "pred_depth_map_logits": pred_depth_map_logits,
    }
    # aux_loss=True
    out["aux_outputs"] = [
        {"scores": a, "boxes_3d": b, "size_3d": c, "heading_angle": d, "depth": e}
        for a, b, c, d, e in zip(outputs_class[:-1], outputs_coord[:-1],
                                 outputs_3d_dim[:-1], outputs_angle[:-1],
                                 outputs_depth[:-1])
    ]
    return out


monodetr_forward_jit = jax.jit(monodetr_forward)


# ----------------------------- main -------------------------------------------
if __name__ == "__main__":
    key = jax.random.PRNGKey(0)
    kp, kimg = jax.random.split(key)
    params = init_params(kp)
    packed = pack_params(params)      # packed ONCE at init (hoisted out of the call path)

    images = jax.random.normal(kimg, IMG_SHAPE, jnp.float32)
    calibs = jnp.tile(jnp.array([[[700.0, 0.0, 16.0, 0.0],
                                  [0.0, 700.0, 16.0, 0.0],
                                  [0.0, 0.0, 1.0, 0.0]]], jnp.float32), (B, 1, 1))
    img_sizes = jnp.tile(jnp.array([[32.0, 32.0]], jnp.float32), (B, 1))

    out = monodetr_forward_jit(packed, images, calibs, img_sizes)
    jax.block_until_ready(out["scores"])
    jax.block_until_ready(out["boxes_3d"])
    jax.block_until_ready(out["depth"])
    print("KERNEL_OK")
</pallas_src>

<mosaic_0001>
module attributes {stable_mosaic.version = 11 : i64} {
  func.func @input_proj_kernel(%arg0: i32, %arg1: memref<128x16xf32, #tpu.memory_space<vmem>>, %arg2: memref<32x32xf32, #tpu.memory_space<vmem>>, %arg3: memref<64x128xbf16, #tpu.memory_space<vmem>>, %arg4: memref<16x128xf32, #tpu.memory_space<vmem>>, %arg5: memref<8x160xf32, #tpu.memory_space<vmem>>, %arg6: memref<160x8xf32, #tpu.memory_space<vmem>>, %arg7: memref<160x128xf32, #tpu.memory_space<vmem>>) attributes {dimension_semantics = [#tpu.dimension_semantics<arbitrary>], iteration_bounds = array<i64: 1>, scalar_prefetch = 0 : i64, scratch_operands = 0 : i64, tpu.core_type = #tpu.core_type<tc>, window_params = [{pipeline_mode = #tpu.pipeline_mode<synchronous>, transform_indices = @transform_0, window_bounds = array<i64: 128, 16>}, {pipeline_mode = #tpu.pipeline_mode<synchronous>, transform_indices = @transform_1, window_bounds = array<i64: 32, 32>}, {pipeline_mode = #tpu.pipeline_mode<synchronous>, transform_indices = @transform_2, window_bounds = array<i64: 64, 128>}, {pipeline_mode = #tpu.pipeline_mode<synchronous>, transform_indices = @transform_3, window_bounds = array<i64: 16, 128>}, {pipeline_mode = #tpu.pipeline_mode<synchronous>, transform_indices = @transform_4, window_bounds = array<i64: 8, 160>}, {pipeline_mode = #tpu.pipeline_mode<synchronous>, transform_indices = @transform_5, window_bounds = array<i64: 160, 8>}, {pipeline_mode = #tpu.pipeline_mode<synchronous>, transform_indices = @transform_6, window_bounds = array<i64: 160, 128>}]} {
    %c0 = arith.constant 0 : index
    %c0_0 = arith.constant 0 : index
    %0 = vector.load %arg3[%c0, %c0_0] : memref<64x128xbf16, #tpu.memory_space<vmem>>, vector<64x128xbf16>
    %c0_1 = arith.constant 0 : index
    %c0_2 = arith.constant 0 : index
    %1 = vector.load %arg1[%c0_1, %c0_2] : memref<128x16xf32, #tpu.memory_space<vmem>>, vector<128x16xf32>
    %2 = arith.truncf %1 : vector<128x16xf32> to vector<128x16xbf16>
    %3 = vector.extract_strided_slice %0 {offsets = [0, 0], sizes = [16, 128], strides = [1, 1]} : vector<64x128xbf16> to vector<16x128xbf16>
    %cst = arith.constant dense<0.000000e+00> : vector<128x128xf32>
    %4 = tpu.matmul %2, %3, %cst {dimension_numbers = #tpu.dot_dimension_numbers<[1], [0], [0], [1], [0, 0, 1, 1], [], []>} : vector<128x16xbf16>, vector<16x128xbf16>, vector<128x128xf32> -> vector<128x128xf32>
    %c0_3 = arith.constant 0 : index
    %c0_4 = arith.constant 0 : index
    %5 = vector.load %arg2[%c0_3, %c0_4] : memref<32x32xf32, #tpu.memory_space<vmem>>, vector<32x32xf32>
    %6 = arith.truncf %5 : vector<32x32xf32> to vector<32x32xbf16>
    %7 = vector.extract_strided_slice %0 {offsets = [32, 0], sizes = [32, 128], strides = [1, 1]} : vector<64x128xbf16> to vector<32x128xbf16>
    %cst_5 = arith.constant dense<0.000000e+00> : vector<32x128xf32>
    %8 = tpu.matmul %6, %7, %cst_5 {dimension_numbers = #tpu.dot_dimension_numbers<[1], [0], [0], [1], [0, 0, 1, 1], [], []>} : vector<32x32xbf16>, vector<32x128xbf16>, vector<32x128xf32> -> vector<32x128xf32>
    %9 = tpu.concatenate %4, %8 in 0 : vector<128x128xf32>, vector<32x128xf32> -> vector<160x128xf32>
    %c0_6 = arith.constant 0 : index
    %c0_7 = arith.constant 0 : index
    %10 = vector.load %arg5[%c0_6, %c0_7] : memref<8x160xf32, #tpu.memory_space<vmem>>, vector<8x160xf32>
    %c0_8 = arith.constant 0 : index
    %c0_9 = arith.constant 0 : index
    %11 = vector.load %arg6[%c0_8, %c0_9] : memref<160x8xf32, #tpu.memory_space<vmem>>, vector<160x8xf32>
    %c0_10 = arith.constant 0 : index
    %c0_11 = arith.constant 0 : index
    %12 = vector.load %arg4[%c0_10, %c0_11] : memref<16x128xf32, #tpu.memory_space<vmem>>, vector<16x128xf32>
    %cst_12 = arith.constant dense<0.000000e+00> : vector<8x128xf32>
    %13 = tpu.matmul %10, %9, %cst_12 {dimension_numbers = #tpu.dot_dimension_numbers<[1], [0], [0], [1], [0, 0, 1, 1], [], []>} : vector<8x160xf32>, vector<160x128xf32>, vector<8x128xf32> -> vector<8x128xf32>
    %cst_13 = arith.constant dense<0.000000e+00> : vector<160x128xf32>
    %14 = tpu.matmul %11, %13, %cst_13 {dimension_numbers = #tpu.dot_dimension_numbers<[1], [0], [0], [1], [0, 0, 1, 1], [], []>} : vector<160x8xf32>, vector<8x128xf32>, vector<160x128xf32> -> vector<160x128xf32>
    %15 = arith.subf %9, %14 : vector<160x128xf32>
    %16 = arith.mulf %15, %15 : vector<160x128xf32>
    %cst_14 = arith.constant dense<0.000000e+00> : vector<8x128xf32>
    %17 = tpu.matmul %10, %16, %cst_14 {dimension_numbers = #tpu.dot_dimension_numbers<[1], [0], [0], [1], [0, 0, 1, 1], [], []>} : vector<8x160xf32>, vector<160x128xf32>, vector<8x128xf32> -> vector<8x128xf32>
    %18 = vector.extract_strided_slice %12 {offsets = [0, 0], sizes = [8, 128], strides = [1, 1]} : vector<16x128xf32> to vector<8x128xf32>
    %cst_15 = arith.constant 9.99999974E-6 : f32
    %19 = vector.broadcast %cst_15 : f32 to vector<8x128xf32>
    %20 = arith.addf %17, %19 : vector<8x128xf32>
    %21 = math.rsqrt %20 : vector<8x128xf32>
    %22 = arith.mulf %18, %21 : vector<8x128xf32>
    %cst_16 = arith.constant dense<0.000000e+00> : vector<160x128xf32>
    %23 = tpu.matmul %11, %22, %cst_16 {dimension_numbers = #tpu.dot_dimension_numbers<[1], [0], [0], [1], [0, 0, 1, 1], [], []>} : vector<160x8xf32>, vector<8x128xf32>, vector<160x128xf32> -> vector<160x128xf32>
    %24 = arith.mulf %15, %23 : vector<160x128xf32>
    %25 = vector.extract_strided_slice %12 {offsets = [8, 0], sizes = [8, 128], strides = [1, 1]} : vector<16x128xf32> to vector<8x128xf32>
    %cst_17 = arith.constant dense<0.000000e+00> : vector<160x128xf32>
    %26 = tpu.matmul %11, %25, %cst_17 {dimension_numbers = #tpu.dot_dimension_numbers<[1], [0], [0], [1], [0, 0, 1, 1], [], []>} : vector<160x8xf32>, vector<8x128xf32>, vector<160x128xf32> -> vector<160x128xf32>
    %27 = arith.addf %24, %26 : vector<160x128xf32>
    %c0_18 = arith.constant 0 : index
    %c0_19 = arith.constant 0 : index
    %28 = vector.load %arg7[%c0_18, %c0_19] : memref<160x128xf32, #tpu.memory_space<vmem>>, vector<160x128xf32>
    tpu.vector_store %arg7[%c0_18, %c0_19], %27 {strides = array<i32>} : memref<160x128xf32, #tpu.memory_space<vmem>>, vector<160x128xf32>,
    return
  }
  func.func @transform_0(%arg0: i32) -> (i32, i32) {
    %c0_i32 = arith.constant 0 : i32
    %c0_i32_0 = arith.constant 0 : i32
    %c0_i32_1 = arith.constant 0 : i32
    return %c0_i32, %c0_i32_0 : i32, i32
  }
  func.func @transform_1(%arg0: i32) -> (i32, i32) {
    %c0_i32 = arith.constant 0 : i32
    %c0_i32_0 = arith.constant 0 : i32
    %c0_i32_1 = arith.constant 0 : i32
    return %c0_i32, %c0_i32_0 : i32, i32
  }
  func.func @transform_2(%arg0: i32) -> (i32, i32) {
    %c0_i32 = arith.constant 0 : i32
    %c0_i32_0 = arith.constant 0 : i32
    %c0_i32_1 = arith.constant 0 : i32
    return %c0_i32, %c0_i32_0 : i32, i32
  }
  func.func @transform_3(%arg0: i32) -> (i32, i32) {
    %c0_i32 = arith.constant 0 : i32
    %c0_i32_0 = arith.constant 0 : i32
    %c0_i32_1 = arith.constant 0 : i32
    return %c0_i32, %c0_i32_0 : i32, i32
  }
  func.func @transform_4(%arg0: i32) -> (i32, i32) {
    %c0_i32 = arith.constant 0 : i32
    %c0_i32_0 = arith.constant 0 : i32
    %c0_i32_1 = arith.constant 0 : i32
    return %c0_i32, %c0_i32_0 : i32, i32
  }
  func.func @transform_5(%arg0: i32) -> (i32, i32) {
    %c0_i32 = arith.constant 0 : i32
    %c0_i32_0 = arith.constant 0 : i32
    %c0_i32_1 = arith.constant 0 : i32
    return %c0_i32, %c0_i32_0 : i32, i32
  }
  func.func @transform_6(%arg0: i32) -> (i32, i32) {
    %c0_i32 = arith.constant 0 : i32
    %c0_i32_0 = arith.constant 0 : i32
    %c0_i32_1 = arith.constant 0 : i32
    return %c0_i32, %c0_i32_0 : i32, i32
  }
}

module attributes {stable_mosaic.version = 11 : i64} {
  func.func @head_kernel(%arg0: i32, %arg1: memref<32x32xf32, #tpu.memory_space<vmem>>, %arg2: memref<32x8xf32, #tpu.memory_space<vmem>>, %arg3: memref<384x128xbf16, #tpu.memory_space<vmem>>, %arg4: memref<8x128xf32, #tpu.memory_space<vmem>>, %arg5: memref<32x128xf32, #tpu.memory_space<vmem>>) attributes {dimension_semantics = [#tpu.dimension_semantics<arbitrary>], iteration_bounds = array<i64: 1>, scalar_prefetch = 0 : i64, scratch_operands = 0 : i64, tpu.core_type = #tpu.core_type<tc>, window_params = [{pipeline_mode = #tpu.pipeline_mode<synchronous>, transform_indices = @transform_0, window_bounds = array<i64: 32, 32>}, {pipeline_mode = #tpu.pipeline_mode<synchronous>, transform_indices = @transform_1, window_bounds = array<i64: 32, 8>}, {pipeline_mode = #tpu.pipeline_mode<synchronous>, transform_indices = @transform_2, window_bounds = array<i64: 384, 128>}, {pipeline_mode = #tpu.pipeline_mode<synchronous>, transform_indices = @transform_3, window_bounds = array<i64: 8, 128>}, {pipeline_mode = #tpu.pipeline_mode<synchronous>, transform_indices = @transform_4, window_bounds = array<i64: 32, 128>}]} {
    %c0 = arith.constant 0 : index
    %c0_0 = arith.constant 0 : index
    %0 = vector.load %arg1[%c0, %c0_0] : memref<32x32xf32, #tpu.memory_space<vmem>>, vector<32x32xf32>
    %c0_1 = arith.constant 0 : index
    %c0_2 = arith.constant 0 : index
    %1 = vector.load %arg2[%c0_1, %c0_2] : memref<32x8xf32, #tpu.memory_space<vmem>>, vector<32x8xf32>
    %c0_3 = arith.constant 0 : index
    %c0_4 = arith.constant 0 : index
    %2 = vector.load %arg3[%c0_3, %c0_4] : memref<384x128xbf16, #tpu.memory_space<vmem>>, vector<384x128xbf16>
    %c0_5 = arith.constant 0 : index
    %c0_6 = arith.constant 0 : index
    %3 = vector.load %arg4[%c0_5, %c0_6] : memref<8x128xf32, #tpu.memory_space<vmem>>, vector<8x128xf32>
    %4 = arith.truncf %0 : vector<32x32xf32> to vector<32x32xbf16>
    %5 = vector.extract_strided_slice %2 {offsets = [0, 0], sizes = [32, 128], strides = [1, 1]} : vector<384x128xbf16> to vector<32x128xbf16>
    %cst = arith.constant dense<0.000000e+00> : vector<32x128xf32>
    %6 = tpu.matmul %4, %5, %cst {dimension_numbers = #tpu.dot_dimension_numbers<[1], [0], [0], [1], [0, 0, 1, 1], [], []>} : vector<32x32xbf16>, vector<32x128xbf16>, vector<32x128xf32> -> vector<32x128xf32>
    %7 = vector.extract_strided_slice %3 {offsets = [0, 0], sizes = [1, 128], strides = [1, 1]} : vector<8x128xf32> to vector<1x128xf32>
    %8 = vector.broadcast %7 : vector<1x128xf32> to vector<32x128xf32>
    %9 = arith.addf %6, %8 : vector<32x128xf32>
    %cst_7 = arith.constant 0.000000e+00 : f32
    %10 = vector.broadcast %cst_7 : f32 to vector<32x128xf32>
    %11 = arith.maximumf %9, %10 : vector<32x128xf32>
    %12 = arith.truncf %11 : vector<32x128xf32> to vector<32x128xbf16>
    %13 = vector.extract_strided_slice %2 {offsets = [128, 0], sizes = [128, 128], strides = [1, 1]} : vector<384x128xbf16> to vector<128x128xbf16>
    %cst_8 = arith.constant dense<0.000000e+00> : vector<32x128xf32>
    %14 = tpu.matmul %12, %13, %cst_8 {dimension_numbers = #tpu.dot_dimension_numbers<[1], [0], [0], [1], [0, 0, 1, 1], [], []>} : vector<32x128xbf16>, vector<128x128xbf16>, vector<32x128xf32> -> vector<32x128xf32>
    %15 = vector.extract_strided_slice %3 {offsets = [1, 0], sizes = [1, 128], strides = [1, 1]} : vector<8x128xf32> to vector<1x128xf32>
    %16 = vector.broadcast %15 : vector<1x128xf32> to vector<32x128xf32>
    %17 = arith.addf %14, %16 : vector<32x128xf32>
    %cst_9 = arith.constant 0.000000e+00 : f32
    %18 = vector.broadcast %cst_9 : f32 to vector<32x128xf32>
    %19 = arith.maximumf %17, %18 : vector<32x128xf32>
    %20 = arith.truncf %19 : vector<32x128xf32> to vector<32x128xbf16>
    %21 = vector.extract_strided_slice %2 {offsets = [256, 0], sizes = [128, 128], strides = [1, 1]} : vector<384x128xbf16> to vector<128x128xbf16>
    %cst_10 = arith.constant dense<0.000000e+00> : vector<32x128xf32>
    %22 = tpu.matmul %20, %21, %cst_10 {dimension_numbers = #tpu.dot_dimension_numbers<[1], [0], [0], [1], [0, 0, 1, 1], [], []>} : vector<32x128xbf16>, vector<128x128xbf16>, vector<32x128xf32> -> vector<32x128xf32>
    %23 = vector.extract_strided_slice %3 {offsets = [2, 0], sizes = [1, 128], strides = [1, 1]} : vector<8x128xf32> to vector<1x128xf32>
    %24 = vector.broadcast %23 : vector<1x128xf32> to vector<32x128xf32>
    %25 = arith.addf %22, %24 : vector<32x128xf32>
    %26 = tpu.iota {dimensions = array<i32: 1>} : vector<32x128xi32>
    %c0_i32 = arith.constant 0 : i32
    %27 = vector.broadcast %c0_i32 : i32 to vector<32x128xi32>
    %28 = arith.cmpi eq, %26, %27 : vector<32x128xi32>
    %29 = vector.extract_strided_slice %1 {offsets = [0, 0], sizes = [32, 1], strides = [1, 1]} : vector<32x8xf32> to vector<32x1xf32>
    %c1_i32 = arith.constant 1 : i32
    %30 = vector.broadcast %c1_i32 : i32 to vector<32x128xi32>
    %31 = arith.cmpi eq, %26, %30 : vector<32x128xi32>
    %32 = vector.extract_strided_slice %1 {offsets = [0, 1], sizes = [32, 1], strides = [1, 1]} : vector<32x8xf32> to vector<32x1xf32>
    %cst_11 = arith.constant 0.000000e+00 : f32
    %33 = vector.shape_cast %32 : vector<32x1xf32> to vector<32x1xf32>
    %34 = vector.broadcast %33 : vector<32x1xf32> to vector<32x128xf32>
    %35 = vector.broadcast %cst_11 : f32 to vector<32x128xf32>
    %36 = arith.select %31, %34, %35 : vector<32x128xi1>, vector<32x128xf32>
    %37 = vector.shape_cast %29 : vector<32x1xf32> to vector<32x1xf32>
    %38 = vector.broadcast %37 : vector<32x1xf32> to vector<32x128xf32>
    %39 = arith.select %28, %38, %36 : vector<32x128xi1>, vector<32x128xf32>
    %40 = arith.addf %25, %39 : vector<32x128xf32>
    %41 = arith.negf %40 : vector<32x128xf32>
    %42 = math.exp %41 : vector<32x128xf32>
    %cst_12 = arith.constant 1.000000e+00 : f32
    %43 = vector.broadcast %cst_12 : f32 to vector<32x128xf32>
    %44 = arith.addf %43, %42 : vector<32x128xf32>
    %45 = arith.divf %43, %44 : vector<32x128xf32>
    %46 = vector.extract_strided_slice %1 {offsets = [0, 2], sizes = [32, 1], strides = [1, 1]} : vector<32x8xf32> to vector<32x1xf32>
    %47 = vector.extract_strided_slice %1 {offsets = [0, 3], sizes = [32, 1], strides = [1, 1]} : vector<32x8xf32> to vector<32x1xf32>
    %48 = vector.extract_strided_slice %1 {offsets = [0, 4], sizes = [32, 1], strides = [1, 1]} : vector<32x8xf32> to vector<32x1xf32>
    %49 = vector.extract_strided_slice %45 {offsets = [0, 4], sizes = [32, 1], strides = [1, 1]} : vector<32x128xf32> to vector<32x1xf32>
    %50 = vector.extract_strided_slice %45 {offsets = [0, 5], sizes = [32, 1], strides = [1, 1]} : vector<32x128xf32> to vector<32x1xf32>
    %51 = arith.addf %49, %50 : vector<32x1xf32>
    %52 = arith.mulf %51, %47 : vector<32x1xf32>
    %cst_13 = arith.constant 1.000000e+00 : f32
    %53 = vector.broadcast %cst_13 : f32 to vector<32x1xf32>
    %54 = arith.maximumf %52, %53 : vector<32x1xf32>
    %55 = arith.divf %46, %54 : vector<32x1xf32>
    %56 = arith.mulf %55, %48 : vector<32x1xf32>
    %c6_i32 = arith.constant 6 : i32
    %57 = vector.broadcast %c6_i32 : i32 to vector<32x128xi32>
    %58 = arith.cmpi slt, %26, %57 : vector<32x128xi32>
    %c9_i32 = arith.constant 9 : i32
    %59 = vector.broadcast %c9_i32 : i32 to vector<32x128xi32>
    %60 = arith.cmpi slt, %26, %59 : vector<32x128xi32>
    %c35_i32 = arith.constant 35 : i32
    %61 = vector.broadcast %c35_i32 : i32 to vector<32x128xi32>
    %62 = arith.cmpi slt, %26, %61 : vector<32x128xi32>
    %c36_i32 = arith.constant 36 : i32
    %63 = vector.broadcast %c36_i32 : i32 to vector<32x128xi32>
    %64 = arith.cmpi slt, %26, %63 : vector<32x128xi32>
    %cst_14 = arith.constant 0.000000e+00 : f32
    %65 = vector.shape_cast %56 : vector<32x1xf32> to vector<32x1xf32>
    %66 = vector.broadcast %65 : vector<32x1xf32> to vector<32x128xf32>
    %67 = vector.broadcast %cst_14 : f32 to vector<32x128xf32>
    %68 = arith.select %64, %66, %67 : vector<32x128xi1>, vector<32x128xf32>
    %69 = arith.select %62, %17, %68 : vector<32x128xi1>, vector<32x128xf32>
    %70 = arith.select %60, %9, %69 : vector<32x128xi1>, vector<32x128xf32>
    %71 = arith.select %58, %45, %70 : vector<32x128xi1>, vector<32x128xf32>
    %c0_15 = arith.constant 0 : index
    %c0_16 = arith.constant 0 : index
    %72 = vector.load %arg5[%c0_15, %c0_16] : memref<32x128xf32, #tpu.memory_space<vmem>>, vector<32x128xf32>
    tpu.vector_store %arg5[%c0_15, %c0_16], %71 {strides = array<i32>} : memref<32x128xf32, #tpu.memory_space<vmem>>, vector<32x128xf32>,
    return
  }
  func.func @transform_0(%arg0: i32) -> (i32, i32) {
    %c0_i32 = arith.constant 0 : i32
    %c0_i32_0 = arith.constant 0 : i32
    %c0_i32_1 = arith.constant 0 : i32
    return %c0_i32, %c0_i32_0 : i32, i32
  }
  func.func @transform_1(%arg0: i32) -> (i32, i32) {
    %c0_i32 = arith.constant 0 : i32
    %c0_i32_0 = arith.constant 0 : i32
    %c0_i32_1 = arith.constant 0 : i32
    return %c0_i32, %c0_i32_0 : i32, i32
  }
  func.func @transform_2(%arg0: i32) -> (i32, i32) {
    %c0_i32 = arith.constant 0 : i32
    %c0_i32_0 = arith.constant 0 : i32
    %c0_i32_1 = arith.constant 0 : i32
    return %c0_i32, %c0_i32_0 : i32, i32
  }
  func.func @transform_3(%arg0: i32) -> (i32, i32) {
    %c0_i32 = arith.constant 0 : i32
    %c0_i32_0 = arith.constant 0 : i32
    %c0_i32_1 = arith.constant 0 : i32
    return %c0_i32, %c0_i32_0 : i32, i32
  }
  func.func @transform_4(%arg0: i32) -> (i32, i32) {
    %c0_i32 = arith.constant 0 : i32
    %c0_i32_0 = arith.constant 0 : i32
    %c0_i32_1 = arith.constant 0 : i32
    return %c0_i32, %c0_i32_0 : i32, i32
  }
}

</mosaic_0001>

<llo_original>
// kernel: monodetr_forward.2
$region0: #{monodetr_forward.2}
  #allocation0 [shape = 'u32[]', space=smem, size = 0x4, offset = 0x4, fixed_abs, tag = 'smem constant byte address 0x4 - core index']
  #allocation1 [shape = 'u32[144,128]{1,0:T(1,128)}', space=vmem, size = 0x12000, scoped, tag = 'internal scratch']
  %s0 = inlined_call_operand.vmem [shape: f32[128,16], index: 0, kind: input, shape index: {}]
  %s1 = inlined_call_operand.vmem [shape: f32[32,32], index: 1, kind: input, shape index: {}]
  %s2 = inlined_call_operand.vmem [shape: bf16[64,128], index: 2, kind: input, shape index: {}]
  %s3 = inlined_call_operand.vmem [shape: f32[16,128], index: 3, kind: input, shape index: {}]
  %s4 = inlined_call_operand.vmem [shape: f32[8,160], index: 4, kind: input, shape index: {}]
  %s5 = inlined_call_operand.vmem [shape: f32[160,8], index: 5, kind: input, shape index: {}]
  %s6 = inlined_call_operand.vmem [shape: f32[160,128], index: 6, kind: output, shape index: {}]
  %s7 = sld [smem:[#allocation0]]
  $region34: #{monodetr_forward.2} parent=0
    _
  %s9 = ssub.s32 1, %s7
  %s10 = scalar_select 0, %s9, %s7
  // Predicated region
  $region2: #{monodetr_forward.2} parent=0 // pred_check
    _
  $region3: #{monodetr_forward.2} parent=0 // pred_check_branch
    %12 = sbr.rel (0) target = $region5
  $region4: #{monodetr_forward.2} parent=0 // pred_region
    _
  $region5: #{monodetr_forward.2} parent=0 // pred_fallthru
    _
  // Predicated region
  $region6: #{monodetr_forward.2} parent=0 // pred_check
    _
  $region7: #{monodetr_forward.2} parent=0 // pred_check_branch
    %14 = sbr.rel (0) target = $region9
  $region8: #{monodetr_forward.2} parent=0 // pred_region
    _
  $region9: #{monodetr_forward.2} parent=0 // pred_fallthru
    _
  // Predicated region
  $region10: #{monodetr_forward.2} parent=0 // pred_check
    _
  $region11: #{monodetr_forward.2} parent=0 // pred_check_branch
    %16 = sbr.rel (0) target = $region13
  $region12: #{monodetr_forward.2} parent=0 // pred_region
    _
  $region13: #{monodetr_forward.2} parent=0 // pred_fallthru
    _
  // Predicated region
  $region14: #{monodetr_forward.2} parent=0 // pred_check
    _
  $region15: #{monodetr_forward.2} parent=0 // pred_check_branch
    %18 = sbr.rel (0) target = $region17
  $region16: #{monodetr_forward.2} parent=0 // pred_region
    _
  $region17: #{monodetr_forward.2} parent=0 // pred_fallthru
    _
  // Predicated region
  $region18: #{monodetr_forward.2} parent=0 // pred_check
    _
  $region19: #{monodetr_forward.2} parent=0 // pred_check_branch
    %20 = sbr.rel (0) target = $region21
  $region20: #{monodetr_forward.2} parent=0 // pred_region
    _
  $region21: #{monodetr_forward.2} parent=0 // pred_fallthru
    _
  // Predicated region
  $region22: #{monodetr_forward.2} parent=0 // pred_check
    _
  $region23: #{monodetr_forward.2} parent=0 // pred_check_branch
    %22 = sbr.rel (0) target = $region25
  $region24: #{monodetr_forward.2} parent=0 // pred_region
    _
  $region25: #{monodetr_forward.2} parent=0 // pred_fallthru
    _
  %v24 = vld [vmem:[%s2] sm:$0xf]
  %v25 = vld [vmem:[%s2 + $0x4] sm:$0xf]
  %v26 = vld [vmem:[%s2 + $0x10] sm:$0xf]
  %v27 = vld [vmem:[%s2 + $0x14] sm:$0xf]
  %v28 = vld [vmem:[%s2 + $0x18] sm:$0xf]
  %v29 = vld [vmem:[%s2 + $0x1c] sm:$0xf]
  %v30 = vld [vmem:[%s0] sm:$0xff]
  %v31 = vld [vmem:[%s0 + $0x8] sm:$0xff]
  %v32 = vld [vmem:[%s0 + $0x10] sm:$0xff]
  %v33 = vld [vmem:[%s0 + $0x18] sm:$0xff]
  %v34 = vld [vmem:[%s0 + $0x20] sm:$0xff]
  %v35 = vld [vmem:[%s0 + $0x28] sm:$0xff]
  %v36 = vld [vmem:[%s0 + $0x30] sm:$0xff]
  %v37 = vld [vmem:[%s0 + $0x38] sm:$0xff]
  %v38 = vld [vmem:[%s0 + $0x40] sm:$0xff]
  %v39 = vld [vmem:[%s0 + $0x48] sm:$0xff]
  %v40 = vld [vmem:[%s0 + $0x50] sm:$0xff]
  %v41 = vld [vmem:[%s0 + $0x58] sm:$0xff]
  %v42 = vld [vmem:[%s0 + $0x60] sm:$0xff]
  %v43 = vld [vmem:[%s0 + $0x68] sm:$0xff]
  %v44 = vld [vmem:[%s0 + $0x70] sm:$0xff]
  %v45 = vld [vmem:[%s0 + $0x78] sm:$0xff]
  %v46 = vpack.c.bf16 %v31, %v30
  %v47 = vpack.c.bf16 %v33, %v32
  %v48 = vpack.c.bf16 %v35, %v34
  %v49 = vpack.c.bf16 %v37, %v36
  %v50 = vpack.c.bf16 %v39, %v38
  %v51 = vpack.c.bf16 %v41, %v40
  %v52 = vpack.c.bf16 %v43, %v42
  %v53 = vpack.c.bf16 %v45, %v44
  %v56 = vunpack.c.l.b16 %v24
  %v57 = vunpack.c.l.b16 %v25
  %v58 = vpack.c.b16 %v57, %v56
  %vm60 = vcmask 130048
  %v62 = vsel %vm60, %v46, 0
  %v65 = vsel %vm60, %v47, 0
  %v68 = vsel %vm60, %v48, 0
  %v71 = vsel %vm60, %v49, 0
  %v74 = vsel %vm60, %v50, 0
  %v77 = vsel %vm60, %v51, 0
  %v80 = vsel %vm60, %v52, 0
  %v83 = vsel %vm60, %v53, 0
  %85 = vmatprep.subr.bf16.mxu0 0
  %86 = vmatpush1.bf16.msra.mxu0 %v58
  %87 = vmatprep.subr.bf16.mxu0 0
  %88 = vmatpush1.bf16.msra.mxu0 0
  %89 = vmatprep.subr.bf16.mxu0 0
  %90 = vmatpush1.bf16.msra.mxu0 0
  %91 = vmatprep.subr.bf16.mxu0 0
  %92 = vmatpush1.bf16.msra.mxu0 0
  %93 = vmatprep.subr.bf16.mxu0 0
  %94 = vmatpush1.bf16.msra.mxu0 0
  %95 = vmatprep.subr.bf16.mxu0 0
  %96 = vmatpush1.bf16.msra.mxu0 0
  %97 = vmatprep.subr.bf16.mxu0 0
  %98 = vmatpush1.bf16.msra.mxu0 0
  %99 = vmatprep.subr.bf16.mxu0 0
  %100 = vmatpush1.bf16.msra.mxu0 0
  %101 = vmatprep.subr.bf16.mxu0 0
  %102 = vmatpush1.bf16.msra.mxu0 0
  %103 = vmatprep.subr.bf16.mxu0 0
  %104 = vmatpush1.bf16.msra.mxu0 0
  %105 = vmatprep.subr.bf16.mxu0 0
  %106 = vmatpush1.bf16.msra.mxu0 0
  %107 = vmatprep.subr.bf16.mxu0 0
  %108 = vmatpush1.bf16.msra.mxu0 0
  %109 = vmatprep.subr.bf16.mxu0 0
  %110 = vmatpush1.bf16.msra.mxu0 0
  %111 = vmatprep.subr.bf16.mxu0 0
  %112 = vmatpush1.bf16.msra.mxu0 0
  %113 = vmatprep.subr.bf16.mxu0 0
  %114 = vmatpush1.bf16.msra.mxu0 0
  %115 = vmatprep.subr.bf16.mxu0 0
  %116 = vmatpush1.bf16.msra.mxu0 0
  %117 = vmatprep.mubr.bf16.mxu0 0
  %118 = vmatmul.mubr.bf16.gmra.mrb[0].mxu0 %v62
  %v119 = vpop.f32.mrb[0].mxu0
  %v120 = vadd.f32 0.0, %v119
  %v121 = vpop.f32.mrb[0].mxu0
  %v122 = vpop.f32.mrb[0].mxu0
  %v123 = vadd.f32 0.0, %v122
  %v124 = vpop.f32.mrb[0].mxu0
  %125 = vmatprep.mubr.bf16.mxu0 0
  %126 = vmatmul.mubr.bf16.gmra.mrb[0].mxu0 %v65
  %v127 = vpop.f32.mrb[0].mxu0
  %v128 = vadd.f32 0.0, %v127
  %v129 = vpop.f32.mrb[0].mxu0
  %v130 = vpop.f32.mrb[0].mxu0
  %v131 = vadd.f32 0.0, %v130
  %v132 = vpop.f32.mrb[0].mxu0
  %133 = vmatprep.mubr.bf16.mxu0 0
  %134 = vmatmul.mubr.bf16.gmra.mrb[0].mxu0 %v68
  %v135 = vpop.f32.mrb[0].mxu0
  %v136 = vadd.f32 0.0, %v135
  %v137 = vpop.f32.mrb[0].mxu0
  %v138 = vpop.f32.mrb[0].mxu0
  %v139 = vadd.f32 0.0, %v138
  %v140 = vpop.f32.mrb[0].mxu0
  %141 = vmatprep.mubr.bf16.mxu0 0
  %142 = vmatmul.mubr.bf16.gmra.mrb[0].mxu0 %v71
  %v143 = vpop.f32.mrb[0].mxu0
  %v144 = vadd.f32 0.0, %v143
  %v145 = vpop.f32.mrb[0].mxu0
  %v146 = vpop.f32.mrb[0].mxu0
  %v147 = vadd.f32 0.0, %v146
  %v148 = vpop.f32.mrb[0].mxu0
  %149 = vmatprep.mubr.bf16.mxu0 0
  %150 = vmatmul.mubr.bf16.gmra.mrb[0].mxu0 %v74
  %v151 = vpop.f32.mrb[0].mxu0
  %v152 = vadd.f32 0.0, %v151
  %v153 = vpop.f32.mrb[0].mxu0
  %v154 = vpop.f32.mrb[0].mxu0
  %v155 = vadd.f32 0.0, %v154
  %v156 = vpop.f32.mrb[0].mxu0
  %157 = vmatprep.mubr.bf16.mxu0 0
  %158 = vmatmul.mubr.bf16.gmra.mrb[0].mxu0 %v77
  %v159 = vpop.f32.mrb[0].mxu0
  %v160 = vadd.f32 0.0, %v159
  %v161 = vpop.f32.mrb[0].mxu0
  %v162 = vpop.f32.mrb[0].mxu0
  %v163 = vadd.f32 0.0, %v162
  %v164 = vpop.f32.mrb[0].mxu0
  %165 = vmatprep.mubr.bf16.mxu0 0
  %166 = vmatmul.mubr.bf16.gmra.mrb[0].mxu0 %v80
  %v167 = vpop.f32.mrb[0].mxu0
  %v168 = vadd.f32 0.0, %v167
  %v169 = vpop.f32.mrb[0].mxu0
  %v170 = vpop.f32.mrb[0].mxu0
  %v171 = vadd.f32 0.0, %v170
  %v172 = vpop.f32.mrb[0].mxu0
  %173 = vmatprep.mubr.bf16.mxu0 0
  %174 = vmatmul.mubr.bf16.gmra.mrb[0].mxu0 %v83
  %v175 = vpop.f32.mrb[0].mxu0
  %v176 = vadd.f32 0.0, %v175
  %v177 = vpop.f32.mrb[0].mxu0
  %v178 = vpop.f32.mrb[0].mxu0
  %v179 = vadd.f32 0.0, %v178
  %v180 = vpop.f32.mrb[0].mxu0
  %181 = vdwg.mxu0
  %v182 = vld [vmem:[%s1] sm:$0xff]
  %v183 = vld [vmem:[%s1 + $0x8] sm:$0xff]
  %v184 = vld [vmem:[%s1 + $0x10] sm:$0xff]
  %v185 = vld [vmem:[%s1 + $0x18] sm:$0xff]
  %v186 = vpack.c.bf16 %v183, %v182
  %v187 = vpack.c.bf16 %v185, %v184
  %v192 = vunpack.c.l.b16 %v26
  %v193 = vunpack.c.l.b16 %v27
  %v194 = vunpack.c.l.b16 %v28
  %v195 = vunpack.c.l.b16 %v29
  %v196 = vpack.c.b16 %v193, %v192
  %v197 = vpack.c.b16 %v195, %v194
  %vm200 = vcmask 261120
  %v202 = vsel %vm200, %v186, 0
  %v205 = vsel %vm200, %v187, 0
  %207 = vmatprep.subr.bf16.mxu0 0
  %208 = vmatpush1.bf16.msra.mxu0 %v196
  %209 = vmatprep.subr.bf16.mxu0 0
  %210 = vmatpush1.bf16.msra.mxu0 %v197
  %211 = vmatprep.subr.bf16.mxu0 0
  %212 = vmatpush1.bf16.msra.mxu0 0
  %213 = vmatprep.subr.bf16.mxu0 0
  %214 = vmatpush1.bf16.msra.mxu0 0
  %215 = vmatprep.subr.bf16.mxu0 0
  %216 = vmatpush1.bf16.msra.mxu0 0
  %217 = vmatprep.subr.bf16.mxu0 0
  %218 = vmatpush1.bf16.msra.mxu0 0
  %219 = vmatprep.subr.bf16.mxu0 0
  %220 = vmatpush1.bf16.msra.mxu0 0
  %221 = vmatprep.subr.bf16.mxu0 0
  %222 = vmatpush1.bf16.msra.mxu0 0
  %223 = vmatprep.subr.bf16.mxu0 0
  %224 = vmatpush1.bf16.msra.mxu0 0
  %225 = vmatprep.subr.bf16.mxu0 0
  %226 = vmatpush1.bf16.msra.mxu0 0
  %227 = vmatprep.subr.bf16.mxu0 0
  %228 = vmatpush1.bf16.msra.mxu0 0
  %229 = vmatprep.subr.bf16.mxu0 0
  %230 = vmatpush1.bf16.msra.mxu0 0
  %231 = vmatprep.subr.bf16.mxu0 0
  %232 = vmatpush1.bf16.msra.mxu0 0
  %233 = vmatprep.subr.bf16.mxu0 0
  %234 = vmatpush1.bf16.msra.mxu0 0
  %235 = vmatprep.subr.bf16.mxu0 0
  %236 = vmatpush1.bf16.msra.mxu0 0
  %237 = vmatprep.subr.bf16.mxu0 0
  %238 = vmatpush1.bf16.msra.mxu0 0
  %239 = vmatprep.mubr.bf16.mxu0 0
  %240 = vmatmul.mubr.bf16.gmra.mrb[0].mxu0 %v202
  %v241 = vpop.f32.mrb[0].mxu0
  %v242 = vadd.f32 0.0, %v241
  %v243 = vpop.f32.mrb[0].mxu0
  %v244 = vpop.f32.mrb[0].mxu0
  %v245 = vadd.f32 0.0, %v244
  %v246 = vpop.f32.mrb[0].mxu0
  %247 = vmatprep.mubr.bf16.mxu0 0
  %248 = vmatmul.mubr.bf16.gmra.mrb[0].mxu0 %v205
  %v249 = vpop.f32.mrb[0].mxu0
  %v250 = vadd.f32 0.0, %v249
  %v251 = vpop.f32.mrb[0].mxu0
  %v252 = vpop.f32.mrb[0].mxu0
  %v253 = vadd.f32 0.0, %v252
  %v254 = vpop.f32.mrb[0].mxu0
  %255 = vdwg.mxu0
  %v256 = vld [vmem:[%s4] sm:$0xff]
  %v257 = vld [vmem:[%s4 + $0x8] sm:$0xff]
  %v258 = vld [vmem:[%s5] sm:$0xff]
  %v259 = vld [vmem:[%s5 + $0x8] sm:$0xff]
  %v260 = vld [vmem:[%s5 + $0x10] sm:$0xff]
  %v261 = vld [vmem:[%s5 + $0x18] sm:$0xff]
  %v262 = vld [vmem:[%s5 + $0x20] sm:$0xff]
  %v263 = vld [vmem:[%s5 + $0x28] sm:$0xff]
  %v264 = vld [vmem:[%s5 + $0x30] sm:$0xff]
  %v265 = vld [vmem:[%s5 + $0x38] sm:$0xff]
  %v266 = vld [vmem:[%s5 + $0x40] sm:$0xff]
  %v267 = vld [vmem:[%s5 + $0x48] sm:$0xff]
  %v268 = vld [vmem:[%s5 + $0x50] sm:$0xff]
  %v269 = vld [vmem:[%s5 + $0x58] sm:$0xff]
  %v270 = vld [vmem:[%s5 + $0x60] sm:$0xff]
  %v271 = vld [vmem:[%s5 + $0x68] sm:$0xff]
  %v272 = vld [vmem:[%s5 + $0x70] sm:$0xff]
  %v273 = vld [vmem:[%s5 + $0x78] sm:$0xff]
  %v274 = vld [vmem:[%s5 + $0x80] sm:$0xff]
  %v275 = vld [vmem:[%s5 + $0x88] sm:$0xff]
  %v276 = vld [vmem:[%s5 + $0x90] sm:$0xff]
  %v277 = vld [vmem:[%s5 + $0x98] sm:$0xff]
  %v278 = vld [vmem:[%s3] sm:$0xff]
  %v279 = vld [vmem:[%s3 + $0x8] sm:$0xff]
  %v281 = vsel %vm200, %v257, 0
  %283 = vmatprep.subr.mxu0 0.0
  %284 = vmatpush1.msra.mxu0 %v120
  %285 = vmatprep.subr.mxu0 0.0
  %286 = vmatpush1.msra.mxu0 %v123
  %287 = vmatprep.subr.mxu0 0.0
  %288 = vmatpush1.msra.mxu0 %v128
  %289 = vmatprep.subr.mxu0 0.0
  %290 = vmatpush1.msra.mxu0 %v131
  %291 = vmatprep.subr.mxu0 0.0
  %292 = vmatpush1.msra.mxu0 %v136
  %293 = vmatprep.subr.mxu0 0.0
  %294 = vmatpush1.msra.mxu0 %v139
  %295 = vmatprep.subr.mxu0 0.0
  %296 = vmatpush1.msra.mxu0 %v144
  %297 = vmatprep.subr.mxu0 0.0
  %298 = vmatpush1.msra.mxu0 %v147
  %299 = vmatprep.subr.mxu0 0.0
  %300 = vmatpush1.msra.mxu0 %v152
  %301 = vmatprep.subr.mxu0 0.0
  %302 = vmatpush1.msra.mxu0 %v155
  %303 = vmatprep.subr.mxu0 0.0
  %304 = vmatpush1.msra.mxu0 %v160
  %305 = vmatprep.subr.mxu0 0.0
  %306 = vmatpush1.msra.mxu0 %v163
  %307 = vmatprep.subr.mxu0 0.0
  %308 = vmatpush1.msra.mxu0 %v168
  %309 = vmatprep.subr.mxu0 0.0
  %310 = vmatpush1.msra.mxu0 %v171
  %311 = vmatprep.subr.mxu0 0.0
  %312 = vmatpush1.msra.mxu0 %v176
  %313 = vmatprep.subr.mxu0 0.0
  %314 = vmatpush1.msra.mxu0 %v179
  %315 = vmatprep.subr.mxu0 0.0
  %316 = vmatpush1.msra.mxu0 %v242
  %317 = vmatprep.subr.mxu0 0.0
  %318 = vmatpush1.msra.mxu0 %v245
  %319 = vmatprep.subr.mxu0 0.0
  %320 = vmatpush1.msra.mxu0 %v250
  %321 = vmatprep.subr.mxu0 0.0
  %322 = vmatpush1.msra.mxu0 %v253
  %323 = vmatprep.subr.mxu0 0.0
  %324 = vmatpush1.msra.mxu0 0.0
  %325 = vmatprep.subr.mxu0 0.0
  %326 = vmatpush1.msra.mxu0 0.0
  %327 = vmatprep.subr.mxu0 0.0
  %328 = vmatpush1.msra.mxu0 0.0
  %329 = vmatprep.subr.mxu0 0.0
  %330 = vmatpush1.msra.mxu0 0.0
  %331 = vmatprep.subr.mxu0 0.0
  %332 = vmatpush1.msra.mxu0 0.0
  %333 = vmatprep.subr.mxu0 0.0
  %334 = vmatpush1.msra.mxu0 0.0
  %335 = vmatprep.subr.mxu0 0.0
  %336 = vmatpush1.msra.mxu0 0.0
  %337 = vmatprep.subr.mxu0 0.0
  %338 = vmatpush1.msra.mxu0 0.0
  %339 = vmatprep.subr.mxu0 0.0
  %340 = vmatpush1.msra.mxu0 0.0
  %341 = vmatprep.subr.mxu0 0.0
  %342 = vmatpush1.msra.mxu0 0.0
  %343 = vmatprep.subr.mxu0 0.0
  %344 = vmatpush1.msra.mxu0 0.0
  %345 = vmatprep.subr.mxu0 0.0
  %346 = vmatpush1.msra.mxu0 0.0
  %347 = vmatprep.mubr.f32.mxu0 %v281
  %348 = vmatmul.mubr.f32.gmra.mrb[0].mxu0 %v256
  %v349 = vpop.f32.mrb[0].mxu0
  %v350 = vadd.f32 0.0, %v349
  %v351 = vpop.f32.mrb[0].mxu0
  %352 = vdwg.mxu0
  %vm353 = vcmask 64512
  %v355 = vsel %vm353, %v258, 0
  %v358 = vsel %vm353, %v259, 0
  %v361 = vsel %vm353, %v260, 0
  %v364 = vsel %vm353, %v261, 0
  %v367 = vsel %vm353, %v262, 0
  %v370 = vsel %vm353, %v263, 0
  %v373 = vsel %vm353, %v264, 0
  %v376 = vsel %vm353, %v265, 0
  %v379 = vsel %vm353, %v266, 0
  %v382 = vsel %vm353, %v267, 0
  %v385 = vsel %vm353, %v268, 0
  %v388 = vsel %vm353, %v269, 0
  %v391 = vsel %vm353, %v270, 0
  %v394 = vsel %vm353, %v271, 0
  %v397 = vsel %vm353, %v272, 0
  %v400 = vsel %vm353, %v273, 0
  %v403 = vsel %vm353, %v274, 0
  %v406 = vsel %vm353, %v275, 0
  %v409 = vsel %vm353, %v276, 0
  %v412 = vsel %vm353, %v277, 0
  %414 = vmatprep.subr.mxu0 0.0
  %415 = vmatpush1.msra.mxu0 %v350
  %416 = vmatprep.subr.mxu0 0.0
  %417 = vmatpush1.msra.mxu0 0.0
  %418 = vmatprep.subr.mxu0 0.0
  %419 = vmatpush1.msra.mxu0 0.0
  %420 = vmatprep.subr.mxu0 0.0
  %421 = vmatpush1.msra.mxu0 0.0
  %422 = vmatprep.subr.mxu0 0.0
  %423 = vmatpush1.msra.mxu0 0.0
  %424 = vmatprep.subr.mxu0 0.0
  %425 = vmatpush1.msra.mxu0 0.0
  %426 = vmatprep.subr.mxu0 0.0
  %427 = vmatpush1.msra.mxu0 0.0
  %428 = vmatprep.subr.mxu0 0.0
  %429 = vmatpush1.msra.mxu0 0.0
  %430 = vmatprep.subr.mxu0 0.0
  %431 = vmatpush1.msra.mxu0 0.0
  %432 = vmatprep.subr.mxu0 0.0
  %433 = vmatpush1.msra.mxu0 0.0
  %434 = vmatprep.subr.mxu0 0.0
  %435 = vmatpush1.msra.mxu0 0.0
  %436 = vmatprep.subr.mxu0 0.0
  %437 = vmatpush1.msra.mxu0 0.0
  %438 = vmatprep.subr.mxu0 0.0
  %439 = vmatpush1.msra.mxu0 0.0
  %440 = vmatprep.subr.mxu0 0.0
  %441 = vmatpush1.msra.mxu0 0.0
  %442 = vmatprep.subr.mxu0 0.0
  %443 = vmatpush1.msra.mxu0 0.0
  %444 = vmatprep.subr.mxu0 0.0
  %445 = vmatpush1.msra.mxu0 0.0
  %446 = vmatprep.subr.mxu0 0.0
  %447 = vmatpush1.msra.mxu0 0.0
  %448 = vmatprep.subr.mxu0 0.0
  %449 = vmatpush1.msra.mxu0 0.0
  %450 = vmatprep.subr.mxu0 0.0
  %451 = vmatpush1.msra.mxu0 0.0
  %452 = vmatprep.subr.mxu0 0.0
  %453 = vmatpush1.msra.mxu0 0.0
  %454 = vmatprep.subr.mxu0 0.0
  %455 = vmatpush1.msra.mxu0 0.0
  %456 = vmatprep.subr.mxu0 0.0
  %457 = vmatpush1.msra.mxu0 0.0
  %458 = vmatprep.subr.mxu0 0.0
  %459 = vmatpush1.msra.mxu0 0.0
  %460 = vmatprep.subr.mxu0 0.0
  %461 = vmatpush1.msra.mxu0 0.0
  %462 = vmatprep.subr.mxu0 0.0
  %463 = vmatpush1.msra.mxu0 0.0
  %464 = vmatprep.subr.mxu0 0.0
  %465 = vmatpush1.msra.mxu0 0.0
  %466 = vmatprep.subr.mxu0 0.0
  %467 = vmatpush1.msra.mxu0 0.0
  %468 = vmatprep.subr.mxu0 0.0
  %469 = vmatpush1.msra.mxu0 0.0
  %470 = vmatprep.subr.mxu0 0.0
  %471 = vmatpush1.msra.mxu0 0.0
  %472 = vmatprep.subr.mxu0 0.0
  %473 = vmatpush1.msra.mxu0 0.0
  %474 = vmatprep.subr.mxu0 0.0
  %475 = vmatpush1.msra.mxu0 0.0
  %476 = vmatprep.subr.mxu0 0.0
  %477 = vmatpush1.msra.mxu0 0.0
  %478 = vmatprep.mubr.f32.mxu0 0.0
  %479 = vmatmul.mubr.f32.gmra.mrb[0].mxu0 %v355
  %v480 = vpop.f32.mrb[0].mxu0
  %v481 = vadd.f32 0.0, %v480
  %v482 = vpop.f32.mrb[0].mxu0
  %483 = vmatprep.mubr.f32.mxu0 0.0
  %484 = vmatmul.mubr.f32.gmra.mrb[0].mxu0 %v358
  %v485 = vpop.f32.mrb[0].mxu0
  %v486 = vadd.f32 0.0, %v485
  %v487 = vpop.f32.mrb[0].mxu0
  %488 = vmatprep.mubr.f32.mxu0 0.0
  %489 = vmatmul.mubr.f32.gmra.mrb[0].mxu0 %v361
  %v490 = vpop.f32.mrb[0].mxu0
  %v491 = vadd.f32 0.0, %v490
  %v492 = vpop.f32.mrb[0].mxu0
  %493 = vmatprep.mubr.f32.mxu0 0.0
  %494 = vmatmul.mubr.f32.gmra.mrb[0].mxu0 %v364
  %v495 = vpop.f32.mrb[0].mxu0
  %v496 = vadd.f32 0.0, %v495
  %v497 = vpop.f32.mrb[0].mxu0
  %498 = vmatprep.mubr.f32.mxu0 0.0
  %499 = vmatmul.mubr.f32.gmra.mrb[0].mxu0 %v367
  %v500 = vpop.f32.mrb[0].mxu0
  %v501 = vadd.f32 0.0, %v500
  %v502 = vpop.f32.mrb[0].mxu0
  %503 = vmatprep.mubr.f32.mxu0 0.0
  %504 = vmatmul.mubr.f32.gmra.mrb[0].mxu0 %v370
  %v505 = vpop.f32.mrb[0].mxu0
  %v506 = vadd.f32 0.0, %v505
  %v507 = vpop.f32.mrb[0].mxu0
  %508 = vmatprep.mubr.f32.mxu0 0.0
  %509 = vmatmul.mubr.f32.gmra.mrb[0].mxu0 %v373
  %v510 = vpop.f32.mrb[0].mxu0
  %v511 = vadd.f32 0.0, %v510
  %v512 = vpop.f32.mrb[0].mxu0
  %513 = vmatprep.mubr.f32.mxu0 0.0
  %514 = vmatmul.mubr.f32.gmra.mrb[0].mxu0 %v376
  %v515 = vpop.f32.mrb[0].mxu0
  %v516 = vadd.f32 0.0, %v515
  %v517 = vpop.f32.mrb[0].mxu0
  %518 = vmatprep.mubr.f32.mxu0 0.0
  %519 = vmatmul.mubr.f32.gmra.mrb[0].mxu0 %v379
  %v520 = vpop.f32.mrb[0].mxu0
  %v521 = vadd.f32 0.0, %v520
  %v522 = vpop.f32.mrb[0].mxu0
  %523 = vmatprep.mubr.f32.mxu0 0.0
  %524 = vmatmul.mubr.f32.gmra.mrb[0].mxu0 %v382
  %v525 = vpop.f32.mrb[0].mxu0
  %v526 = vadd.f32 0.0, %v525
  %v527 = vpop.f32.mrb[0].mxu0
  %528 = vmatprep.mubr.f32.mxu0 0.0
  %529 = vmatmul.mubr.f32.gmra.mrb[0].mxu0 %v385
  %v530 = vpop.f32.mrb[0].mxu0
  %v531 = vadd.f32 0.0, %v530
  %v532 = vpop.f32.mrb[0].mxu0
  %533 = vmatprep.mubr.f32.mxu0 0.0
  %534 = vmatmul.mubr.f32.gmra.mrb[0].mxu0 %v388
  %v535 = vpop.f32.mrb[0].mxu0
  %v536 = vadd.f32 0.0, %v535
  %v537 = vpop.f32.mrb[0].mxu0
  %538 = vmatprep.mubr.f32.mxu0 0.0
  %539 = vmatmul.mubr.f32.gmra.mrb[0].mxu0 %v391
  %v540 = vpop.f32.mrb[0].mxu0
  %v541 = vadd.f32 0.0, %v540
  %v542 = vpop.f32.mrb[0].mxu0
  %543 = vmatprep.mubr.f32.mxu0 0.0
  %544 = vmatmul.mubr.f32.gmra.mrb[0].mxu0 %v394
  %v545 = vpop.f32.mrb[0].mxu0
  %v546 = vadd.f32 0.0, %v545
  %v547 = vpop.f32.mrb[0].mxu0
  %548 = vmatprep.mubr.f32.mxu0 0.0
  %549 = vmatmul.mubr.f32.gmra.mrb[0].mxu0 %v397
  %v550 = vpop.f32.mrb[0].mxu0
  %v551 = vadd.f32 0.0, %v550
  %v552 = vpop.f32.mrb[0].mxu0
  %553 = vmatprep.mubr.f32.mxu0 0.0
  %554 = vmatmul.mubr.f32.gmra.mrb[0].mxu0 %v400
  %v555 = vpop.f32.mrb[0].mxu0
  %v556 = vadd.f32 0.0, %v555
  %v557 = vpop.f32.mrb[0].mxu0
  %558 = vmatprep.mubr.f32.mxu0 0.0
  %559 = vmatmul.mubr.f32.gmra.mrb[0].mxu0 %v403
  %v560 = vpop.f32.mrb[0].mxu0
  %v561 = vadd.f32 0.0, %v560
  %v562 = vpop.f32.mrb[0].mxu0
  %563 = vmatprep.mubr.f32.mxu0 0.0
  %564 = vmatmul.mubr.f32.gmra.mrb[0].mxu0 %v406
  %v565 = vpop.f32.mrb[0].mxu0
  %v566 = vadd.f32 0.0, %v565
  %v567 = vpop.f32.mrb[0].mxu0
  %568 = vmatprep.mubr.f32.mxu0 0.0
  %569 = vmatmul.mubr.f32.gmra.mrb[0].mxu0 %v409
  %v570 = vpop.f32.mrb[0].mxu0
  %v571 = vadd.f32 0.0, %v570
  %v572 = vpop.f32.mrb[0].mxu0
  %573 = vmatprep.mubr.f32.mxu0 0.0
  %574 = vmatmul.mubr.f32.gmra.mrb[0].mxu0 %v412
  %v575 = vpop.f32.mrb[0].mxu0
  %v576 = vadd.f32 0.0, %v575
  %v577 = vpop.f32.mrb[0].mxu0
  %578 = vdwg.mxu0
  %v579 = vsub.f32 %v120, %v481
  %v580 = vsub.f32 %v123, %v486
  %v581 = vsub.f32 %v128, %v491
  %v582 = vsub.f32 %v131, %v496
  %v583 = vsub.f32 %v136, %v501
  %v584 = vsub.f32 %v139, %v506
  %v585 = vsub.f32 %v144, %v511
  %v586 = vsub.f32 %v147, %v516
  %v587 = vsub.f32 %v152, %v521
  %v588 = vsub.f32 %v155, %v526
  %v589 = vsub.f32 %v160, %v531
  %v590 = vsub.f32 %v163, %v536
  %v591 = vsub.f32 %v168, %v541
  %v592 = vsub.f32 %v171, %v546
  %v593 = vsub.f32 %v176, %v551
  %v594 = vsub.f32 %v179, %v556
  %v595 = vsub.f32 %v242, %v561
  %v596 = vsub.f32 %v245, %v566
  %v597 = vsub.f32 %v250, %v571
  %v598 = vsub.f32 %v253, %v576
  %v599 = vmul.f32 %v579, %v579
  %v600 = vmul.f32 %v580, %v580
  %v601 = vmul.f32 %v581, %v581
  %v602 = vmul.f32 %v582, %v582
  %v603 = vmul.f32 %v583, %v583
  %v604 = vmul.f32 %v584, %v584
  %v605 = vmul.f32 %v585, %v585
  %v606 = vmul.f32 %v586, %v586
  %v607 = vmul.f32 %v587, %v587
  %v608 = vmul.f32 %v588, %v588
  %v609 = vmul.f32 %v589, %v589
  %v610 = vmul.f32 %v590, %v590
  %v611 = vmul.f32 %v591, %v591
  %v612 = vmul.f32 %v592, %v592
  %v613 = vmul.f32 %v593, %v593
  %v614 = vmul.f32 %v594, %v594
  %v615 = vmul.f32 %v595, %v595
  %v616 = vmul.f32 %v596, %v596
  %v617 = vmul.f32 %v597, %v597
  %v618 = vmul.f32 %v598, %v598
  %619 = vmatprep.subr.mxu0 0.0
  %620 = vmatpush1.msra.mxu0 %v599
  %621 = vmatprep.subr.mxu0 0.0
  %622 = vmatpush1.msra.mxu0 %v600
  %623 = vmatprep.subr.mxu0 0.0
  %624 = vmatpush1.msra.mxu0 %v601
  %625 = vmatprep.subr.mxu0 0.0
  %626 = vmatpush1.msra.mxu0 %v602
  %627 = vmatprep.subr.mxu0 0.0
  %628 = vmatpush1.msra.mxu0 %v603
  %629 = vmatprep.subr.mxu0 0.0
  %630 = vmatpush1.msra.mxu0 %v604
  %631 = vmatprep.subr.mxu0 0.0
  %632 = vmatpush1.msra.mxu0 %v605
  %633 = vmatprep.subr.mxu0 0.0
  %634 = vmatpush1.msra.mxu0 %v606
  %635 = vmatprep.subr.mxu0 0.0
  %636 = vmatpush1.msra.mxu0 %v607
  %637 = vmatprep.subr.mxu0 0.0
  %638 = vmatpush1.msra.mxu0 %v608
  %639 = vmatprep.subr.mxu0 0.0
  %640 = vmatpush1.msra.mxu0 %v609
  %641 = vmatprep.subr.mxu0 0.0
  %642 = vmatpush1.msra.mxu0 %v610
  %643 = vmatprep.subr.mxu0 0.0
  %644 = vmatpush1.msra.mxu0 %v611
  %645 = vmatprep.subr.mxu0 0.0
  %646 = vmatpush1.msra.mxu0 %v612
  %647 = vmatprep.subr.mxu0 0.0
  %648 = vmatpush1.msra.mxu0 %v613
  %649 = vmatprep.subr.mxu0 0.0
  %650 = vmatpush1.msra.mxu0 %v614
  %651 = vmatprep.subr.mxu0 0.0
  %652 = vmatpush1.msra.mxu0 %v615
  %653 = vmatprep.subr.mxu0 0.0
  %654 = vmatpush1.msra.mxu0 %v616
  %655 = vmatprep.subr.mxu0 0.0
  %656 = vmatpush1.msra.mxu0 %v617
  %657 = vmatprep.subr.mxu0 0.0
  %658 = vmatpush1.msra.mxu0 %v618
  %659 = vmatprep.subr.mxu0 0.0
  %660 = vmatpush1.msra.mxu0 0.0
  %661 = vmatprep.subr.mxu0 0.0
  %662 = vmatpush1.msra.mxu0 0.0
  %663 = vmatprep.subr.mxu0 0.0
  %664 = vmatpush1.msra.mxu0 0.0
  %665 = vmatprep.subr.mxu0 0.0
  %666 = vmatpush1.msra.mxu0 0.0
  %667 = vmatprep.subr.mxu0 0.0
  %668 = vmatpush1.msra.mxu0 0.0
  %669 = vmatprep.subr.mxu0 0.0
  %670 = vmatpush1.msra.mxu0 0.0
  %671 = vmatprep.subr.mxu0 0.0
  %672 = vmatpush1.msra.mxu0 0.0
  %673 = vmatprep.subr.mxu0 0.0
  %674 = vmatpush1.msra.mxu0 0.0
  %675 = vmatprep.subr.mxu0 0.0
  %676 = vmatpush1.msra.mxu0 0.0
  %677 = vmatprep.subr.mxu0 0.0
  %678 = vmatpush1.msra.mxu0 0.0
  %679 = vmatprep.subr.mxu0 0.0
  %680 = vmatpush1.msra.mxu0 0.0
  %681 = vmatprep.subr.mxu0 0.0
  %682 = vmatpush1.msra.mxu0 0.0
  %683 = vmatprep.mubr.f32.mxu0 %v281
  %684 = vmatmul.mubr.f32.gmra.mrb[0].mxu0 %v256
  %v685 = vpop.f32.mrb[0].mxu0
  %v686 = vadd.f32 1e-05, %v685
  %v687 = vpop.f32.mrb[0].mxu0
  %688 = vdwg.mxu0
  %v689 = vrsqrt.pop %v686
  %v690 = vmul.f32 %v278, %v689
  %691 = vmatprep.subr.mxu0 0.0
  %692 = vmatpush1.msra.mxu0 %v690
  %693 = vmatprep.subr.mxu0 0.0
  %694 = vmatpush1.msra.mxu0 0.0
  %695 = vmatprep.subr.mxu0 0.0
  %696 = vmatpush1.msra.mxu0 0.0
  %697 = vmatprep.subr.mxu0 0.0
  %698 = vmatpush1.msra.mxu0 0.0
  %699 = vmatprep.subr.mxu0 0.0
  %700 = vmatpush1.msra.mxu0 0.0
  %701 = vmatprep.subr.mxu0 0.0
  %702 = vmatpush1.msra.mxu0 0.0
  %703 = vmatprep.subr.mxu0 0.0
  %704 = vmatpush1.msra.mxu0 0.0
  %705 = vmatprep.subr.mxu0 0.0
  %706 = vmatpush1.msra.mxu0 0.0
  %707 = vmatprep.subr.mxu0 0.0
  %708 = vmatpush1.msra.mxu0 0.0
  %709 = vmatprep.subr.mxu0 0.0
  %710 = vmatpush1.msra.mxu0 0.0
  %711 = vmatprep.subr.mxu0 0.0
  %712 = vmatpush1.msra.mxu0 0.0
  %713 = vmatprep.subr.mxu0 0.0
  %714 = vmatpush1.msra.mxu0 0.0
  %715 = vmatprep.subr.mxu0 0.0
  %716 = vmatpush1.msra.mxu0 0.0
  %717 = vmatprep.subr.mxu0 0.0
  %718 = vmatpush1.msra.mxu0 0.0
  %719 = vmatprep.subr.mxu0 0.0
  %720 = vmatpush1.msra.mxu0 0.0
  %721 = vmatprep.subr.mxu0 0.0
  %722 = vmatpush1.msra.mxu0 0.0
  %723 = vmatprep.subr.mxu0 0.0
  %724 = vmatpush1.msra.mxu0 0.0
  %725 = vmatprep.subr.mxu0 0.0
  %726 = vmatpush1.msra.mxu0 0.0
  %727 = vmatprep.subr.mxu0 0.0
  %728 = vmatpush1.msra.mxu0 0.0
  %729 = vmatprep.subr.mxu0 0.0
  %730 = vmatpush1.msra.mxu0 0.0
  %731 = vmatprep.subr.mxu0 0.0
  %732 = vmatpush1.msra.mxu0 0.0
  %733 = vmatprep.subr.mxu0 0.0
  %734 = vmatpush1.msra.mxu0 0.0
  %735 = vmatprep.subr.mxu0 0.0
  %736 = vmatpush1.msra.mxu0 0.0
  %737 = vmatprep.subr.mxu0 0.0
  %738 = vmatpush1.msra.mxu0 0.0
  %739 = vmatprep.subr.mxu0 0.0
  %740 = vmatpush1.msra.mxu0 0.0
  %741 = vmatprep.subr.mxu0 0.0
  %742 = vmatpush1.msra.mxu0 0.0
  %743 = vmatprep.subr.mxu0 0.0
  %744 = vmatpush1.msra.mxu0 0.0
  %745 = vmatprep.subr.mxu0 0.0
  %746 = vmatpush1.msra.mxu0 0.0
  %747 = vmatprep.subr.mxu0 0.0
  %748 = vmatpush1.msra.mxu0 0.0
  %749 = vmatprep.subr.mxu0 0.0
  %750 = vmatpush1.msra.mxu0 0.0
  %751 = vmatprep.subr.mxu0 0.0
  %752 = vmatpush1.msra.mxu0 0.0
  %753 = vmatprep.subr.mxu0 0.0
  %754 = vmatpush1.msra.mxu0 0.0
  %755 = vmatprep.mubr.f32.mxu0 0.0
  %756 = vmatmul.mubr.f32.gmra.mrb[0].mxu0 %v355
  %v757 = vpop.f32.mrb[0].mxu0
  %v758 = vadd.f32 0.0, %v757
  %v759 = vpop.f32.mrb[0].mxu0
  %760 = vmatprep.mubr.f32.mxu0 0.0
  %761 = vmatmul.mubr.f32.gmra.mrb[0].mxu0 %v358
  %v762 = vpop.f32.mrb[0].mxu0
  %v763 = vadd.f32 0.0, %v762
  %v764 = vpop.f32.mrb[0].mxu0
  %765 = vmatprep.mubr.f32.mxu0 0.0
  %766 = vmatmul.mubr.f32.gmra.mrb[0].mxu0 %v361
  %v767 = vpop.f32.mrb[0].mxu0
  %v768 = vadd.f32 0.0, %v767
  %v769 = vpop.f32.mrb[0].mxu0
  %770 = vmatprep.mubr.f32.mxu0 0.0
  %771 = vmatmul.mubr.f32.gmra.mrb[0].mxu0 %v364
  %v772 = vpop.f32.mrb[0].mxu0
  %v773 = vadd.f32 0.0, %v772
  %v774 = vpop.f32.mrb[0].mxu0
  %775 = vmatprep.mubr.f32.mxu0 0.0
  %776 = vmatmul.mubr.f32.gmra.mrb[0].mxu0 %v367
  %v777 = vpop.f32.mrb[0].mxu0
  %v778 = vadd.f32 0.0, %v777
  %v779 = vpop.f32.mrb[0].mxu0
  %780 = vmatprep.mubr.f32.mxu0 0.0
  %781 = vmatmul.mubr.f32.gmra.mrb[0].mxu0 %v370
  %v782 = vpop.f32.mrb[0].mxu0
  %v783 = vadd.f32 0.0, %v782
  %v784 = vpop.f32.mrb[0].mxu0
  %785 = vmatprep.mubr.f32.mxu0 0.0
  %786 = vmatmul.mubr.f32.gmra.mrb[0].mxu0 %v373
  %v787 = vpop.f32.mrb[0].mxu0
  %v788 = vadd.f32 0.0, %v787
  %v789 = vpop.f32.mrb[0].mxu0
  %790 = vmatprep.mubr.f32.mxu0 0.0
  %791 = vmatmul.mubr.f32.gmra.mrb[0].mxu0 %v376
  %v792 = vpop.f32.mrb[0].mxu0
  %v793 = vadd.f32 0.0, %v792
  %v794 = vpop.f32.mrb[0].mxu0
  %795 = vmatprep.mubr.f32.mxu0 0.0
  %796 = vmatmul.mubr.f32.gmra.mrb[0].mxu0 %v379
  %v797 = vpop.f32.mrb[0].mxu0
  %v798 = vadd.f32 0.0, %v797
  %v799 = vpop.f32.mrb[0].mxu0
  %800 = vmatprep.mubr.f32.mxu0 0.0
  %801 = vmatmul.mubr.f32.gmra.mrb[0].mxu0 %v382
  %v802 = vpop.f32.mrb[0].mxu0
  %v803 = vadd.f32 0.0, %v802
  %v804 = vpop.f32.mrb[0].mxu0
  %805 = vmatprep.mubr.f32.mxu0 0.0
  %806 = vmatmul.mubr.f32.gmra.mrb[0].mxu0 %v385
  %v807 = vpop.f32.mrb[0].mxu0
  %v808 = vadd.f32 0.0, %v807
  %v809 = vpop.f32.mrb[0].mxu0
  %810 = vmatprep.mubr.f32.mxu0 0.0
  %811 = vmatmul.mubr.f32.gmra.mrb[0].mxu0 %v388
  %v812 = vpop.f32.mrb[0].mxu0
  %v813 = vadd.f32 0.0, %v812
  %v814 = vpop.f32.mrb[0].mxu0
  %815 = vmatprep.mubr.f32.mxu0 0.0
  %816 = vmatmul.mubr.f32.gmra.mrb[0].mxu0 %v391
  %v817 = vpop.f32.mrb[0].mxu0
  %v818 = vadd.f32 0.0, %v817
  %v819 = vpop.f32.mrb[0].mxu0
  %820 = vmatprep.mubr.f32.mxu0 0.0
  %821 = vmatmul.mubr.f32.gmra.mrb[0].mxu0 %v394
  %v822 = vpop.f32.mrb[0].mxu0
  %v823 = vadd.f32 0.0, %v822
  %v824 = vpop.f32.mrb[0].mxu0
  %825 = vmatprep.mubr.f32.mxu0 0.0
  %826 = vmatmul.mubr.f32.gmra.mrb[0].mxu0 %v397
  %v827 = vpop.f32.mrb[0].mxu0
  %v828 = vadd.f32 0.0, %v827
  %v829 = vpop.f32.mrb[0].mxu0
  %830 = vmatprep.mubr.f32.mxu0 0.0
  %831 = vmatmul.mubr.f32.gmra.mrb[0].mxu0 %v400
  %v832 = vpop.f32.mrb[0].mxu0
  %v833 = vadd.f32 0.0, %v832
  %v834 = vpop.f32.mrb[0].mxu0
  %835 = vmatprep.mubr.f32.mxu0 0.0
  %836 = vmatmul.mubr.f32.gmra.mrb[0].mxu0 %v403
  %v837 = vpop.f32.mrb[0].mxu0
  %v838 = vadd.f32 0.0, %v837
  %v839 = vpop.f32.mrb[0].mxu0
  %840 = vmatprep.mubr.f32.mxu0 0.0
  %841 = vmatmul.mubr.f32.gmra.mrb[0].mxu0 %v406
  %v842 = vpop.f32.mrb[0].mxu0
  %v843 = vadd.f32 0.0, %v842
  %v844 = vpop.f32.mrb[0].mxu0
  %845 = vmatprep.mubr.f32.mxu0 0.0
  %846 = vmatmul.mubr.f32.gmra.mrb[0].mxu0 %v409
  %v847 = vpop.f32.mrb[0].mxu0
  %v848 = vadd.f32 0.0, %v847
  %v849 = vpop.f32.mrb[0].mxu0
  %850 = vmatprep.mubr.f32.mxu0 0.0
  %851 = vmatmul.mubr.f32.gmra.mrb[0].mxu0 %v412
  %v852 = vpop.f32.mrb[0].mxu0
  %v853 = vadd.f32 0.0, %v852
  %v854 = vpop.f32.mrb[0].mxu0
  %855 = vdwg.mxu0
  %v856 = vmul.f32 %v579, %v758
  %v857 = vmul.f32 %v580, %v763
  %v858 = vmul.f32 %v581, %v768
  %v859 = vmul.f32 %v582, %v773
  %v860 = vmul.f32 %v583, %v778
  %v861 = vmul.f32 %v584, %v783
  %v862 = vmul.f32 %v585, %v788
  %v863 = vmul.f32 %v586, %v793
  %v864 = vmul.f32 %v587, %v798
  %v865 = vmul.f32 %v588, %v803
  %v866 = vmul.f32 %v589, %v808
  %v867 = vmul.f32 %v590, %v813
  %v868 = vmul.f32 %v591, %v818
  %v869 = vmul.f32 %v592, %v823
  %v870 = vmul.f32 %v593, %v828
  %v871 = vmul.f32 %v594, %v833
  %v872 = vmul.f32 %v595, %v838
  %v873 = vmul.f32 %v596, %v843
  %v874 = vmul.f32 %v597, %v848
  %v875 = vmul.f32 %v598, %v853
  %876 = vmatprep.subr.mxu0 0.0
  %877 = vmatpush1.msra.mxu0 %v279
  %878 = vmatprep.subr.mxu0 0.0
  %879 = vmatpush1.msra.mxu0 0.0
  %880 = vmatprep.subr.mxu0 0.0
  %881 = vmatpush1.msra.mxu0 0.0
  %882 = vmatprep.subr.mxu0 0.0
  %883 = vmatpush1.msra.mxu0 0.0
  %884 = vmatprep.subr.mxu0 0.0
  %885 = vmatpush1.msra.mxu0 0.0
  %886 = vmatprep.subr.mxu0 0.0
  %887 = vmatpush1.msra.mxu0 0.0
  %888 = vmatprep.subr.mxu0 0.0
  %889 = vmatpush1.msra.mxu0 0.0
  %890 = vmatprep.subr.mxu0 0.0
  %891 = vmatpush1.msra.mxu0 0.0
  %892 = vmatprep.subr.mxu0 0.0
  %893 = vmatpush1.msra.mxu0 0.0
  %894 = vmatprep.subr.mxu0 0.0
  %895 = vmatpush1.msra.mxu0 0.0
  %896 = vmatprep.subr.mxu0 0.0
  %897 = vmatpush1.msra.mxu0 0.0
  %898 = vmatprep.subr.mxu0 0.0
  %899 = vmatpush1.msra.mxu0 0.0
  %900 = vmatprep.subr.mxu0 0.0
  %901 = vmatpush1.msra.mxu0 0.0
  %902 = vmatprep.subr.mxu0 0.0
  %903 = vmatpush1.msra.mxu0 0.0
  %904 = vmatprep.subr.mxu0 0.0
  %905 = vmatpush1.msra.mxu0 0.0
  %906 = vmatprep.subr.mxu0 0.0
  %907 = vmatpush1.msra.mxu0 0.0
  %908 = vmatprep.subr.mxu0 0.0
  %909 = vmatpush1.msra.mxu0 0.0
  %910 = vmatprep.subr.mxu0 0.0
  %911 = vmatpush1.msra.mxu0 0.0
  %912 = vmatprep.subr.mxu0 0.0
  %913 = vmatpush1.msra.mxu0 0.0
  %914 = vmatprep.subr.mxu0 0.0
  %915 = vmatpush1.msra.mxu0 0.0
  %916 = vmatprep.subr.mxu0 0.0
  %917 = vmatpush1.msra.mxu0 0.0
  %918 = vmatprep.subr.mxu0 0.0
  %919 = vmatpush1.msra.mxu0 0.0
  %920 = vmatprep.subr.mxu0 0.0
  %921 = vmatpush1.msra.mxu0 0.0
  %922 = vmatprep.subr.mxu0 0.0
  %923 = vmatpush1.msra.mxu0 0.0
  %924 = vmatprep.subr.mxu0 0.0
  %925 = vmatpush1.msra.mxu0 0.0
  %926 = vmatprep.subr.mxu0 0.0
  %927 = vmatpush1.msra.mxu0 0.0
  %928 = vmatprep.subr.mxu0 0.0
  %929 = vmatpush1.msra.mxu0 0.0
  %930 = vmatprep.subr.mxu0 0.0
  %931 = vmatpush1.msra.mxu0 0.0
  %932 = vmatprep.subr.mxu0 0.0
  %933 = vmatpush1.msra.mxu0 0.0
  %934 = vmatprep.subr.mxu0 0.0
  %935 = vmatpush1.msra.mxu0 0.0
  %936 = vmatprep.subr.mxu0 0.0
  %937 = vmatpush1.msra.mxu0 0.0
  %938 = vmatprep.subr.mxu0 0.0
  %939 = vmatpush1.msra.mxu0 0.0
  %940 = vmatprep.mubr.f32.mxu0 0.0
  %941 = vmatmul.mubr.f32.gmra.mrb[0].mxu0 %v355
  %v942 = vpop.f32.mrb[0].mxu0
  %v943 = vadd.f32 0.0, %v942
  %v944 = vpop.f32.mrb[0].mxu0
  %945 = vmatprep.mubr.f32.mxu0 0.0
  %946 = vmatmul.mubr.f32.gmra.mrb[0].mxu0 %v358
  %v947 = vpop.f32.mrb[0].mxu0
  %v948 = vadd.f32 0.0, %v947
  %v949 = vpop.f32.mrb[0].mxu0
  %950 = vmatprep.mubr.f32.mxu0 0.0
  %951 = vmatmul.mubr.f32.gmra.mrb[0].mxu0 %v361
  %v952 = vpop.f32.mrb[0].mxu0
  %v953 = vadd.f32 0.0, %v952
  %v954 = vpop.f32.mrb[0].mxu0
  %955 = vmatprep.mubr.f32.mxu0 0.0
  %956 = vmatmul.mubr.f32.gmra.mrb[0].mxu0 %v364
  %v957 = vpop.f32.mrb[0].mxu0
  %v958 = vadd.f32 0.0, %v957
  %v959 = vpop.f32.mrb[0].mxu0
  %960 = vmatprep.mubr.f32.mxu0 0.0
  %961 = vmatmul.mubr.f32.gmra.mrb[0].mxu0 %v367
  %v962 = vpop.f32.mrb[0].mxu0
  %v963 = vadd.f32 0.0, %v962
  %v964 = vpop.f32.mrb[0].mxu0
  %965 = vmatprep.mubr.f32.mxu0 0.0
  %966 = vmatmul.mubr.f32.gmra.mrb[0].mxu0 %v370
  %v967 = vpop.f32.mrb[0].mxu0
  %v968 = vadd.f32 0.0, %v967
  %v969 = vpop.f32.mrb[0].mxu0
  %970 = vmatprep.mubr.f32.mxu0 0.0
  %971 = vmatmul.mubr.f32.gmra.mrb[0].mxu0 %v373
  %v972 = vpop.f32.mrb[0].mxu0
  %v973 = vadd.f32 0.0, %v972
  %v974 = vpop.f32.mrb[0].mxu0
  %975 = vmatprep.mubr.f32.mxu0 0.0
  %976 = vmatmul.mubr.f32.gmra.mrb[0].mxu0 %v376
  %v977 = vpop.f32.mrb[0].mxu0
  %v978 = vadd.f32 0.0, %v977
  %v979 = vpop.f32.mrb[0].mxu0
  %980 = vmatprep.mubr.f32.mxu0 0.0
  %981 = vmatmul.mubr.f32.gmra.mrb[0].mxu0 %v379
  %v982 = vpop.f32.mrb[0].mxu0
  %v983 = vadd.f32 0.0, %v982
  %v984 = vpop.f32.mrb[0].mxu0
  %985 = vmatprep.mubr.f32.mxu0 0.0
  %986 = vmatmul.mubr.f32.gmra.mrb[0].mxu0 %v382
  %v987 = vpop.f32.mrb[0].mxu0
  %v988 = vadd.f32 0.0, %v987
  %v989 = vpop.f32.mrb[0].mxu0
  %990 = vmatprep.mubr.f32.mxu0 0.0
  %991 = vmatmul.mubr.f32.gmra.mrb[0].mxu0 %v385
  %v992 = vpop.f32.mrb[0].mxu0
  %v993 = vadd.f32 0.0, %v992
  %v994 = vpop.f32.mrb[0].mxu0
  %995 = vmatprep.mubr.f32.mxu0 0.0
  %996 = vmatmul.mubr.f32.gmra.mrb[0].mxu0 %v388
  %v997 = vpop.f32.mrb[0].mxu0
  %v998 = vadd.f32 0.0, %v997
  %v999 = vpop.f32.mrb[0].mxu0
  %1000 = vmatprep.mubr.f32.mxu0 0.0
  %1001 = vmatmul.mubr.f32.gmra.mrb[0].mxu0 %v391
  %v1002 = vpop.f32.mrb[0].mxu0
  %v1003 = vadd.f32 0.0, %v1002
  %v1004 = vpop.f32.mrb[0].mxu0
  %1005 = vmatprep.mubr.f32.mxu0 0.0
  %1006 = vmatmul.mubr.f32.gmra.mrb[0].mxu0 %v394
  %v1007 = vpop.f32.mrb[0].mxu0
  %v1008 = vadd.f32 0.0, %v1007
  %v1009 = vpop.f32.mrb[0].mxu0
  %1010 = vmatprep.mubr.f32.mxu0 0.0
  %1011 = vmatmul.mubr.f32.gmra.mrb[0].mxu0 %v397
  %v1012 = vpop.f32.mrb[0].mxu0
  %v1013 = vadd.f32 0.0, %v1012
  %v1014 = vpop.f32.mrb[0].mxu0
  %1015 = vmatprep.mubr.f32.mxu0 0.0
  %1016 = vmatmul.mubr.f32.gmra.mrb[0].mxu0 %v400
  %v1017 = vpop.f32.mrb[0].mxu0
  %v1018 = vadd.f32 0.0, %v1017
  %v1019 = vpop.f32.mrb[0].mxu0
  %1020 = vmatprep.mubr.f32.mxu0 0.0
  %1021 = vmatmul.mubr.f32.gmra.mrb[0].mxu0 %v403
  %v1022 = vpop.f32.mrb[0].mxu0
  %v1023 = vadd.f32 0.0, %v1022
  %v1024 = vpop.f32.mrb[0].mxu0
  %1025 = vmatprep.mubr.f32.mxu0 0.0
  %1026 = vmatmul.mubr.f32.gmra.mrb[0].mxu0 %v406
  %v1027 = vpop.f32.mrb[0].mxu0
  %v1028 = vadd.f32 0.0, %v1027
  %v1029 = vpop.f32.mrb[0].mxu0
  %1030 = vmatprep.mubr.f32.mxu0 0.0
  %1031 = vmatmul.mubr.f32.gmra.mrb[0].mxu0 %v409
  %v1032 = vpop.f32.mrb[0].mxu0
  %v1033 = vadd.f32 0.0, %v1032
  %v1034 = vpop.f32.mrb[0].mxu0
  %1035 = vmatprep.mubr.f32.mxu0 0.0
  %1036 = vmatmul.mubr.f32.gmra.mrb[0].mxu0 %v412
  %v1037 = vpop.f32.mrb[0].mxu0
  %v1038 = vadd.f32 0.0, %v1037
  %v1039 = vpop.f32.mrb[0].mxu0
  %1040 = vdwg.mxu0
  %v1041 = vadd.f32 %v856, %v943
  %v1042 = vadd.f32 %v857, %v948
  %v1043 = vadd.f32 %v858, %v953
  %v1044 = vadd.f32 %v859, %v958
  %v1045 = vadd.f32 %v860, %v963
  %v1046 = vadd.f32 %v861, %v968
  %v1047 = vadd.f32 %v862, %v973
  %v1048 = vadd.f32 %v863, %v978
  %v1049 = vadd.f32 %v864, %v983
  %v1050 = vadd.f32 %v865, %v988
  %v1051 = vadd.f32 %v866, %v993
  %v1052 = vadd.f32 %v867, %v998
  %v1053 = vadd.f32 %v868, %v1003
  %v1054 = vadd.f32 %v869, %v1008
  %v1055 = vadd.f32 %v870, %v1013
  %v1056 = vadd.f32 %v871, %v1018
  %v1057 = vadd.f32 %v872, %v1023
  %v1058 = vadd.f32 %v873, %v1028
  %v1059 = vadd.f32 %v874, %v1033
  %v1060 = vadd.f32 %v875, %v1038
  %1061 = vst [vmem:[%s6] sm:$0xff] %v1041
  %1062 = vst [vmem:[%s6 + $0x8] sm:$0xff] %v1042
  %1063 = vst [vmem:[%s6 + $0x10] sm:$0xff] %v1043
  %1064 = vst [vmem:[%s6 + $0x18] sm:$0xff] %v1044
  %1065 = vst [vmem:[%s6 + $0x20] sm:$0xff] %v1045
  %1066 = vst [vmem:[%s6 + $0x28] sm:$0xff] %v1046
  %1067 = vst [vmem:[%s6 + $0x30] sm:$0xff] %v1047
  %1068 = vst [vmem:[%s6 + $0x38] sm:$0xff] %v1048
  %1069 = vst [vmem:[%s6 + $0x40] sm:$0xff] %v1049
  %1070 = vst [vmem:[%s6 + $0x48] sm:$0xff] %v1050
  %1071 = vst [vmem:[%s6 + $0x50] sm:$0xff] %v1051
  %1072 = vst [vmem:[%s6 + $0x58] sm:$0xff] %v1052
  %1073 = vst [vmem:[%s6 + $0x60] sm:$0xff] %v1053
  %1074 = vst [vmem:[%s6 + $0x68] sm:$0xff] %v1054
  %1075 = vst [vmem:[%s6 + $0x70] sm:$0xff] %v1055
  %1076 = vst [vmem:[%s6 + $0x78] sm:$0xff] %v1056
  %1077 = vst [vmem:[%s6 + $0x80] sm:$0xff] %v1057
  %1078 = vst [vmem:[%s6 + $0x88] sm:$0xff] %v1058
  %1079 = vst [vmem:[%s6 + $0x90] sm:$0xff] %v1059
  %1080 = vst [vmem:[%s6 + $0x98] sm:$0xff] %v1060
  // Predicated region
  $region26: #{monodetr_forward.2} parent=0 // pred_check
    _
  $region27: #{monodetr_forward.2} parent=0 // pred_check_branch
    %1082 = sbr.rel (0) target = $region29
  $region28: #{monodetr_forward.2} parent=0 // pred_region
    _
  $region29: #{monodetr_forward.2} parent=0 // pred_fallthru
    _
  // Predicated region
  $region30: #{monodetr_forward.2} parent=0 // pred_check
    _
  $region31: #{monodetr_forward.2} parent=0 // pred_check_branch
    %1084 = sbr.rel (0) target = $region33
  $region32: #{monodetr_forward.2} parent=0 // pred_region
    _
  $region33: #{monodetr_forward.2} parent=0 // pred_fallthru
    _

// kernel: monodetr_forward.3
$region0: #{monodetr_forward.3}
  #allocation0 [shape = 'u32[]', space=smem, size = 0x4, offset = 0x4, fixed_abs, tag = 'smem constant byte address 0x4 - core index']
  #allocation1 [shape = 'u32[144,128]{1,0:T(1,128)}', space=vmem, size = 0x12000, scoped, tag = 'internal scratch']
  %s0 = inlined_call_operand.vmem [shape: f32[32,32], index: 0, kind: input, shape index: {}]
  %s1 = inlined_call_operand.vmem [shape: f32[32,8], index: 1, kind: input, shape index: {}]
  %s2 = inlined_call_operand.vmem [shape: bf16[384,128], index: 2, kind: input, shape index: {}]
  %s3 = inlined_call_operand.vmem [shape: f32[8,128], index: 3, kind: input, shape index: {}]
  %s4 = inlined_call_operand.vmem [shape: f32[32,128], index: 4, kind: output, shape index: {}]
  %s5 = sld [smem:[#allocation0]]
  $region26: #{monodetr_forward.3} parent=0
    _
  %s7 = ssub.s32 1, %s5
  %s8 = scalar_select 0, %s7, %s5
  // Predicated region
  $region2: #{monodetr_forward.3} parent=0 // pred_check
    _
  $region3: #{monodetr_forward.3} parent=0 // pred_check_branch
    %10 = sbr.rel (0) target = $region5
  $region4: #{monodetr_forward.3} parent=0 // pred_region
    _
  $region5: #{monodetr_forward.3} parent=0 // pred_fallthru
    _
  // Predicated region
  $region6: #{monodetr_forward.3} parent=0 // pred_check
    _
  $region7: #{monodetr_forward.3} parent=0 // pred_check_branch
    %12 = sbr.rel (0) target = $region9
  $region8: #{monodetr_forward.3} parent=0 // pred_region
    _
  $region9: #{monodetr_forward.3} parent=0 // pred_fallthru
    _
  // Predicated region
  $region10: #{monodetr_forward.3} parent=0 // pred_check
    _
  $region11: #{monodetr_forward.3} parent=0 // pred_check_branch
    %14 = sbr.rel (0) target = $region13
  $region12: #{monodetr_forward.3} parent=0 // pred_region
    _
  $region13: #{monodetr_forward.3} parent=0 // pred_fallthru
    _
  // Predicated region
  $region14: #{monodetr_forward.3} parent=0 // pred_check
    _
  $region15: #{monodetr_forward.3} parent=0 // pred_check_branch
    %16 = sbr.rel (0) target = $region17
  $region16: #{monodetr_forward.3} parent=0 // pred_region
    _
  $region17: #{monodetr_forward.3} parent=0 // pred_fallthru
    _
  %v18 = vld [vmem:[%s0] sm:$0xff]
  %v19 = vld [vmem:[%s0 + $0x8] sm:$0xff]
  %v20 = vld [vmem:[%s0 + $0x10] sm:$0xff]
  %v21 = vld [vmem:[%s0 + $0x18] sm:$0xff]
  %v22 = vld [vmem:[%s1] sm:$0xff]
  %v23 = vld [vmem:[%s1 + $0x8] sm:$0xff]
  %v24 = vld [vmem:[%s1 + $0x10] sm:$0xff]
  %v25 = vld [vmem:[%s1 + $0x18] sm:$0xff]
  %v26 = vld [vmem:[%s2] sm:$0xf]
  %v27 = vld [vmem:[%s2 + $0x4] sm:$0xf]
  %v28 = vld [vmem:[%s2 + $0x8] sm:$0xf]
  %v29 = vld [vmem:[%s2 + $0xc] sm:$0xf]
  %v30 = vld [vmem:[%s2 + $0x40] sm:$0xf]
  %v31 = vld [vmem:[%s2 + $0x44] sm:$0xf]
  %v32 = vld [vmem:[%s2 + $0x48] sm:$0xf]
  %v33 = vld [vmem:[%s2 + $0x4c] sm:$0xf]
  %v34 = vld [vmem:[%s2 + $0x50] sm:$0xf]
  %v35 = vld [vmem:[%s2 + $0x54] sm:$0xf]
  %v36 = vld [vmem:[%s2 + $0x58] sm:$0xf]
  %v37 = vld [vmem:[%s2 + $0x5c] sm:$0xf]
  %v38 = vld [vmem:[%s2 + $0x60] sm:$0xf]
  %v39 = vld [vmem:[%s2 + $0x64] sm:$0xf]
  %v40 = vld [vmem:[%s2 + $0x68] sm:$0xf]
  %v41 = vld [vmem:[%s2 + $0x6c] sm:$0xf]
  %v42 = vld [vmem:[%s2 + $0x70] sm:$0xf]
  %v43 = vld [vmem:[%s2 + $0x74] sm:$0xf]
  %v44 = vld [vmem:[%s2 + $0x78] sm:$0xf]
  %v45 = vld [vmem:[%s2 + $0x7c] sm:$0xf]
  %v46 = vld [vmem:[%s2 + $0x80] sm:$0xf]
  %v47 = vld [vmem:[%s2 + $0x84] sm:$0xf]
  %v48 = vld [vmem:[%s2 + $0x88] sm:$0xf]
  %v49 = vld [vmem:[%s2 + $0x8c] sm:$0xf]
  %v50 = vld [vmem:[%s2 + $0x90] sm:$0xf]
  %v51 = vld [vmem:[%s2 + $0x94] sm:$0xf]
  %v52 = vld [vmem:[%s2 + $0x98] sm:$0xf]
  %v53 = vld [vmem:[%s2 + $0x9c] sm:$0xf]
  %v54 = vld [vmem:[%s2 + $0xa0] sm:$0xf]
  %v55 = vld [vmem:[%s2 + $0xa4] sm:$0xf]
  %v56 = vld [vmem:[%s2 + $0xa8] sm:$0xf]
  %v57 = vld [vmem:[%s2 + $0xac] sm:$0xf]
  %v58 = vld [vmem:[%s2 + $0xb0] sm:$0xf]
  %v59 = vld [vmem:[%s2 + $0xb4] sm:$0xf]
  %v60 = vld [vmem:[%s2 + $0xb8] sm:$0xf]
  %v61 = vld [vmem:[%s2 + $0xbc] sm:$0xf]
  %v62 = vld [vmem:[%s3] sm:$0xff]
  %v63 = vpack.c.bf16 %v19, %v18
  %v64 = vpack.c.bf16 %v21, %v20
  %v65 = vlaneseq
  %v66 = vshrl.u32 %v65, 7
  %v67 = vsub.s32 0, %v66
  %v68 = vrot.slane %v62, %v67
  %v73 = vunpack.c.l.b16 %v26
  %v74 = vunpack.c.l.b16 %v27
  %v75 = vunpack.c.l.b16 %v28
  %v76 = vunpack.c.l.b16 %v29
  %v77 = vpack.c.b16 %v74, %v73
  %v78 = vpack.c.b16 %v76, %v75
  %vm81 = vcmask 261120
  %v83 = vsel %vm81, %v63, 0
  %v86 = vsel %vm81, %v64, 0
  %88 = vmatprep.subr.bf16.mxu0 0
  %89 = vmatpush1.bf16.msra.mxu0 %v77
  %90 = vmatprep.subr.bf16.mxu0 0
  %91 = vmatpush1.bf16.msra.mxu0 %v78
  %92 = vmatprep.subr.bf16.mxu0 0
  %93 = vmatpush1.bf16.msra.mxu0 0
  %94 = vmatprep.subr.bf16.mxu0 0
  %95 = vmatpush1.bf16.msra.mxu0 0
  %96 = vmatprep.subr.bf16.mxu0 0
  %97 = vmatpush1.bf16.msra.mxu0 0
  %98 = vmatprep.subr.bf16.mxu0 0
  %99 = vmatpush1.bf16.msra.mxu0 0
  %100 = vmatprep.subr.bf16.mxu0 0
  %101 = vmatpush1.bf16.msra.mxu0 0
  %102 = vmatprep.subr.bf16.mxu0 0
  %103 = vmatpush1.bf16.msra.mxu0 0
  %104 = vmatprep.subr.bf16.mxu0 0
  %105 = vmatpush1.bf16.msra.mxu0 0
  %106 = vmatprep.subr.bf16.mxu0 0
  %107 = vmatpush1.bf16.msra.mxu0 0
  %108 = vmatprep.subr.bf16.mxu0 0
  %109 = vmatpush1.bf16.msra.mxu0 0
  %110 = vmatprep.subr.bf16.mxu0 0
  %111 = vmatpush1.bf16.msra.mxu0 0
  %112 = vmatprep.subr.bf16.mxu0 0
  %113 = vmatpush1.bf16.msra.mxu0 0
  %114 = vmatprep.subr.bf16.mxu0 0
  %115 = vmatpush1.bf16.msra.mxu0 0
  %116 = vmatprep.subr.bf16.mxu0 0
  %117 = vmatpush1.bf16.msra.mxu0 0
  %118 = vmatprep.subr.bf16.mxu0 0
  %119 = vmatpush1.bf16.msra.mxu0 0
  %120 = vmatprep.mubr.bf16.mxu0 0
  %121 = vmatmul.mubr.bf16.gmra.mrb[0].mxu0 %v83
  %v122 = vpop.f32.mrb[0].mxu0
  %v123 = vadd.f32 %v68, %v122
  %v124 = vpop.f32.mrb[0].mxu0
  %v125 = vpop.f32.mrb[0].mxu0
  %v126 = vadd.f32 %v68, %v125
  %v127 = vpop.f32.mrb[0].mxu0
  %128 = vmatprep.mubr.bf16.mxu0 0
  %129 = vmatmul.mubr.bf16.gmra.mrb[0].mxu0 %v86
  %v130 = vpop.f32.mrb[0].mxu0
  %v131 = vadd.f32 %v68, %v130
  %v132 = vpop.f32.mrb[0].mxu0
  %v133 = vpop.f32.mrb[0].mxu0
  %v134 = vadd.f32 %v68, %v133
  %v135 = vpop.f32.mrb[0].mxu0
  %136 = vdwg.mxu0
  %v137 = vmax.f32 %v123, 0.0
  %v138 = vmax.f32 %v126, 0.0
  %v139 = vmax.f32 %v131, 0.0
  %v140 = vmax.f32 %v134, 0.0
  %v141 = vpack.c.bf16 %v138, %v137
  %v142 = vpack.c.bf16 %v140, %v139
  %v143 = vlaneseq
  %v144 = vshrl.u32 %v143, 7
  %v145 = vsub.s32 1, %v144
  %v146 = vrot.slane %v62, %v145
  %v163 = vunpack.c.l.b16 %v30
  %v164 = vunpack.c.l.b16 %v31
  %v165 = vunpack.c.l.b16 %v32
  %v166 = vunpack.c.l.b16 %v33
  %v167 = vunpack.c.l.b16 %v34
  %v168 = vunpack.c.l.b16 %v35
  %v169 = vunpack.c.l.b16 %v36
  %v170 = vunpack.c.l.b16 %v37
  %v171 = vunpack.c.l.b16 %v38
  %v172 = vunpack.c.l.b16 %v39
  %v173 = vunpack.c.l.b16 %v40
  %v174 = vunpack.c.l.b16 %v41
  %v175 = vunpack.c.l.b16 %v42
  %v176 = vunpack.c.l.b16 %v43
  %v177 = vunpack.c.l.b16 %v44
  %v178 = vunpack.c.l.b16 %v45
  %v179 = vpack.c.b16 %v164, %v163
  %v180 = vpack.c.b16 %v166, %v165
  %v181 = vpack.c.b16 %v168, %v167
  %v182 = vpack.c.b16 %v170, %v169
  %v183 = vpack.c.b16 %v172, %v171
  %v184 = vpack.c.b16 %v174, %v173
  %v185 = vpack.c.b16 %v176, %v175
  %v186 = vpack.c.b16 %v178, %v177
  %195 = vmatprep.subr.bf16.mxu0 0
  %196 = vmatpush1.bf16.msra.mxu0 %v179
  %197 = vmatprep.subr.bf16.mxu0 0
  %198 = vmatpush1.bf16.msra.mxu0 %v180
  %199 = vmatprep.subr.bf16.mxu0 0
  %200 = vmatpush1.bf16.msra.mxu0 %v181
  %201 = vmatprep.subr.bf16.mxu0 0
  %202 = vmatpush1.bf16.msra.mxu0 %v182
  %203 = vmatprep.subr.bf16.mxu0 0
  %204 = vmatpush1.bf16.msra.mxu0 %v183
  %205 = vmatprep.subr.bf16.mxu0 0
  %206 = vmatpush1.bf16.msra.mxu0 %v184
  %207 = vmatprep.subr.bf16.mxu0 0
  %208 = vmatpush1.bf16.msra.mxu0 %v185
  %209 = vmatprep.subr.bf16.mxu0 0
  %210 = vmatpush1.bf16.msra.mxu0 %v186
  %211 = vmatprep.subr.bf16.mxu0 0
  %212 = vmatpush1.bf16.msra.mxu0 0
  %213 = vmatprep.subr.bf16.mxu0 0
  %214 = vmatpush1.bf16.msra.mxu0 0
  %215 = vmatprep.subr.bf16.mxu0 0
  %216 = vmatpush1.bf16.msra.mxu0 0
  %217 = vmatprep.subr.bf16.mxu0 0
  %218 = vmatpush1.bf16.msra.mxu0 0
  %219 = vmatprep.subr.bf16.mxu0 0
  %220 = vmatpush1.bf16.msra.mxu0 0
  %221 = vmatprep.subr.bf16.mxu0 0
  %222 = vmatpush1.bf16.msra.mxu0 0
  %223 = vmatprep.subr.bf16.mxu0 0
  %224 = vmatpush1.bf16.msra.mxu0 0
  %225 = vmatprep.subr.bf16.mxu0 0
  %226 = vmatpush1.bf16.msra.mxu0 0
  %227 = vmatprep.mubr.bf16.mxu0 0
  %228 = vmatmul.mubr.bf16.gmra.mrb[0].mxu0 %v141
  %v229 = vpop.f32.mrb[0].mxu0
  %v230 = vadd.f32 %v146, %v229
  %v231 = vpop.f32.mrb[0].mxu0
  %v232 = vpop.f32.mrb[0].mxu0
  %v233 = vadd.f32 %v146, %v232
  %v234 = vpop.f32.mrb[0].mxu0
  %235 = vmatprep.mubr.bf16.mxu0 0
  %236 = vmatmul.mubr.bf16.gmra.mrb[0].mxu0 %v142
  %v237 = vpop.f32.mrb[0].mxu0
  %v238 = vadd.f32 %v146, %v237
  %v239 = vpop.f32.mrb[0].mxu0
  %v240 = vpop.f32.mrb[0].mxu0
  %v241 = vadd.f32 %v146, %v240
  %v242 = vpop.f32.mrb[0].mxu0
  %243 = vdwg.mxu0
  %v244 = vmax.f32 %v230, 0.0
  %v245 = vmax.f32 %v233, 0.0
  %v246 = vmax.f32 %v238, 0.0
  %v247 = vmax.f32 %v241, 0.0
  %v248 = vpack.c.bf16 %v245, %v244
  %v249 = vpack.c.bf16 %v247, %v246
  %v250 = vlaneseq
  %v251 = vshrl.u32 %v250, 7
  %v252 = vsub.s32 2, %v251
  %v253 = vrot.slane %v62, %v252
  %v270 = vunpack.c.l.b16 %v46
  %v271 = vunpack.c.l.b16 %v47
  %v272 = vunpack.c.l.b16 %v48
  %v273 = vunpack.c.l.b16 %v49
  %v274 = vunpack.c.l.b16 %v50
  %v275 = vunpack.c.l.b16 %v51
  %v276 = vunpack.c.l.b16 %v52
  %v277 = vunpack.c.l.b16 %v53
  %v278 = vunpack.c.l.b16 %v54
  %v279 = vunpack.c.l.b16 %v55
  %v280 = vunpack.c.l.b16 %v56
  %v281 = vunpack.c.l.b16 %v57
  %v282 = vunpack.c.l.b16 %v58
  %v283 = vunpack.c.l.b16 %v59
  %v284 = vunpack.c.l.b16 %v60
  %v285 = vunpack.c.l.b16 %v61
  %v286 = vpack.c.b16 %v271, %v270
  %v287 = vpack.c.b16 %v273, %v272
  %v288 = vpack.c.b16 %v275, %v274
  %v289 = vpack.c.b16 %v277, %v276
  %v290 = vpack.c.b16 %v279, %v278
  %v291 = vpack.c.b16 %v281, %v280
  %v292 = vpack.c.b16 %v283, %v282
  %v293 = vpack.c.b16 %v285, %v284
  %302 = vmatprep.subr.bf16.mxu0 0
  %303 = vmatpush1.bf16.msra.mxu0 %v286
  %304 = vmatprep.subr.bf16.mxu0 0
  %305 = vmatpush1.bf16.msra.mxu0 %v287
  %306 = vmatprep.subr.bf16.mxu0 0
  %307 = vmatpush1.bf16.msra.mxu0 %v288
  %308 = vmatprep.subr.bf16.mxu0 0
  %309 = vmatpush1.bf16.msra.mxu0 %v289
  %310 = vmatprep.subr.bf16.mxu0 0
  %311 = vmatpush1.bf16.msra.mxu0 %v290
  %312 = vmatprep.subr.bf16.mxu0 0
  %313 = vmatpush1.bf16.msra.mxu0 %v291
  %314 = vmatprep.subr.bf16.mxu0 0
  %315 = vmatpush1.bf16.msra.mxu0 %v292
  %316 = vmatprep.subr.bf16.mxu0 0
  %317 = vmatpush1.bf16.msra.mxu0 %v293
  %318 = vmatprep.subr.bf16.mxu0 0
  %319 = vmatpush1.bf16.msra.mxu0 0
  %320 = vmatprep.subr.bf16.mxu0 0
  %321 = vmatpush1.bf16.msra.mxu0 0
  %322 = vmatprep.subr.bf16.mxu0 0
  %323 = vmatpush1.bf16.msra.mxu0 0
  %324 = vmatprep.subr.bf16.mxu0 0
  %325 = vmatpush1.bf16.msra.mxu0 0
  %326 = vmatprep.subr.bf16.mxu0 0
  %327 = vmatpush1.bf16.msra.mxu0 0
  %328 = vmatprep.subr.bf16.mxu0 0
  %329 = vmatpush1.bf16.msra.mxu0 0
  %330 = vmatprep.subr.bf16.mxu0 0
  %331 = vmatpush1.bf16.msra.mxu0 0
  %332 = vmatprep.subr.bf16.mxu0 0
  %333 = vmatpush1.bf16.msra.mxu0 0
  %334 = vmatprep.mubr.bf16.mxu0 0
  %335 = vmatmul.mubr.bf16.gmra.mrb[0].mxu0 %v248
  %v336 = vpop.f32.mrb[0].mxu0
  %v337 = vadd.f32 %v253, %v336
  %v338 = vpop.f32.mrb[0].mxu0
  %v339 = vpop.f32.mrb[0].mxu0
  %v340 = vadd.f32 %v253, %v339
  %v341 = vpop.f32.mrb[0].mxu0
  %342 = vmatprep.mubr.bf16.mxu0 0
  %343 = vmatmul.mubr.bf16.gmra.mrb[0].mxu0 %v249
  %v344 = vpop.f32.mrb[0].mxu0
  %v345 = vadd.f32 %v253, %v344
  %v346 = vpop.f32.mrb[0].mxu0
  %v347 = vpop.f32.mrb[0].mxu0
  %v348 = vadd.f32 %v253, %v347
  %v349 = vpop.f32.mrb[0].mxu0
  %350 = vdwg.mxu0
  %v351 = vlaneseq
  %v352 = vand.u32 %v351, 127
  %vm353 = vcmp.eq.s32.totalorder %v352, 0
  %vm354 = vcmp.eq.s32.totalorder %v352, 1
  %356 = vset.pattern.permute.xlu0 1
  %357 = vperm.xlu0 %356, %v22
  %v358 = vpop.permute.xlu0 %357
  %361 = vset.pattern.permute.xlu0 1
  %362 = vperm.xlu0 %361, %v23
  %v363 = vpop.permute.xlu0 %362
  %366 = vset.pattern.permute.xlu0 1
  %367 = vperm.xlu0 %366, %v24
  %v368 = vpop.permute.xlu0 %367
  %371 = vset.pattern.permute.xlu0 1
  %372 = vperm.xlu0 %371, %v25
  %v373 = vpop.permute.xlu0 %372
  %v375 = vsel %vm354, %v358, 0.0
  %v376 = vsel %vm354, %v363, 0.0
  %v377 = vsel %vm354, %v368, 0.0
  %v378 = vsel %vm354, %v373, 0.0
  %379 = vset.pattern.permute.xlu0 0
  %380 = vperm.xlu0 %379, %v22
  %v381 = vpop.permute.xlu0 %380
  %383 = vset.pattern.permute.xlu0 0
  %384 = vperm.xlu0 %383, %v23
  %v385 = vpop.permute.xlu0 %384
  %387 = vset.pattern.permute.xlu0 0
  %388 = vperm.xlu0 %387, %v24
  %v389 = vpop.permute.xlu0 %388
  %391 = vset.pattern.permute.xlu0 0
  %392 = vperm.xlu0 %391, %v25
  %v393 = vpop.permute.xlu0 %392
  %v395 = vsel %vm353, %v381, %v375
  %v396 = vsel %vm353, %v385, %v376
  %v397 = vsel %vm353, %v389, %v377
  %v398 = vsel %vm353, %v393, %v378
  %v399 = vadd.f32 %v337, %v395
  %v400 = vadd.f32 %v340, %v396
  %v401 = vadd.f32 %v345, %v397
  %v402 = vadd.f32 %v348, %v398
  %v403 = vxor.u32 %v399, 2147483648
  %v404 = vxor.u32 %v400, 2147483648
  %v405 = vxor.u32 %v401, 2147483648
  %v406 = vxor.u32 %v402, 2147483648
  %v407 = vmul.f32 %v403, 1.442695
  %v408 = vpow.pop %v407
  %v409 = vmul.f32 %v404, 1.442695
  %v410 = vpow.pop %v409
  %v411 = vmul.f32 %v405, 1.442695
  %v412 = vpow.pop %v411
  %v413 = vmul.f32 %v406, 1.442695
  %v414 = vpow.pop %v413
  %v415 = vadd.f32 %v408, 1.0
  %v416 = vadd.f32 %v410, 1.0
  %v417 = vadd.f32 %v412, 1.0
  %v418 = vadd.f32 %v414, 1.0
  %v419 = vrcp.pop %v415
  %v420 = vmul.f32 1.0, %v419
  %v421 = vrcp.pop %v416
  %v422 = vmul.f32 1.0, %v421
  %v423 = vrcp.pop %v417
  %v424 = vmul.f32 1.0, %v423
  %v425 = vrcp.pop %v418
  %v426 = vmul.f32 1.0, %v425
  %431 = vrot.lane.b32.xlu0 %v420, 127
  %v432 = vpop.permute.xlu0 %431
  %433 = vrot.lane.b32.xlu0 %v422, 127
  %v434 = vpop.permute.xlu0 %433
  %435 = vrot.lane.b32.xlu0 %v424, 127
  %v436 = vpop.permute.xlu0 %435
  %437 = vrot.lane.b32.xlu0 %v426, 127
  %v438 = vpop.permute.xlu0 %437
  %v443 = vadd.f32 %v420, %v432
  %v444 = vadd.f32 %v422, %v434
  %v445 = vadd.f32 %v424, %v436
  %v446 = vadd.f32 %v426, %v438
  %447 = vrot.lane.b32.xlu0 %v22, 1
  %v448 = vpop.permute.xlu0 %447
  %449 = vrot.lane.b32.xlu0 %v23, 1
  %v450 = vpop.permute.xlu0 %449
  %451 = vrot.lane.b32.xlu0 %v24, 1
  %v452 = vpop.permute.xlu0 %451
  %453 = vrot.lane.b32.xlu0 %v25, 1
  %v454 = vpop.permute.xlu0 %453
  %v459 = vmul.f32 %v443, %v448
  %v460 = vmul.f32 %v444, %v450
  %v461 = vmul.f32 %v445, %v452
  %v462 = vmul.f32 %v446, %v454
  %v463 = vmax.f32 %v459, 1.0
  %v464 = vmax.f32 %v460, 1.0
  %v465 = vmax.f32 %v461, 1.0
  %v466 = vmax.f32 %v462, 1.0
  %471 = vrot.lane.b32.xlu0 %v463, 126
  %v472 = vpop.permute.xlu0 %471
  %473 = vrot.lane.b32.xlu0 %v464, 126
  %v474 = vpop.permute.xlu0 %473
  %475 = vrot.lane.b32.xlu0 %v465, 126
  %v476 = vpop.permute.xlu0 %475
  %477 = vrot.lane.b32.xlu0 %v466, 126
  %v478 = vpop.permute.xlu0 %477
  %v483 = vrcp.pop %v472
  %v484 = vmul.f32 %v22, %v483
  %v485 = vrcp.pop %v474
  %v486 = vmul.f32 %v23, %v485
  %v487 = vrcp.pop %v476
  %v488 = vmul.f32 %v24, %v487
  %v489 = vrcp.pop %v478
  %v490 = vmul.f32 %v25, %v489
  %491 = vrot.lane.b32.xlu0 %v22, 126
  %v492 = vpop.permute.xlu0 %491
  %493 = vrot.lane.b32.xlu0 %v23, 126
  %v494 = vpop.permute.xlu0 %493
  %495 = vrot.lane.b32.xlu0 %v24, 126
  %v496 = vpop.permute.xlu0 %495
  %497 = vrot.lane.b32.xlu0 %v25, 126
  %v498 = vpop.permute.xlu0 %497
  %v503 = vmul.f32 %v484, %v492
  %v504 = vmul.f32 %v486, %v494
  %v505 = vmul.f32 %v488, %v496
  %v506 = vmul.f32 %v490, %v498
  %vm507 = vcmp.lt.s32.totalorder %v352, 6
  %vm508 = vcmp.lt.s32.totalorder %v352, 9
  %vm509 = vcmp.lt.s32.totalorder %v352, 35
  %vm510 = vcmp.lt.s32.totalorder %v352, 36
  %512 = vset.pattern.permute.xlu0 2
  %513 = vperm.xlu0 %512, %v503
  %v514 = vpop.permute.xlu0 %513
  %517 = vset.pattern.permute.xlu0 2
  %518 = vperm.xlu0 %517, %v504
  %v519 = vpop.permute.xlu0 %518
  %522 = vset.pattern.permute.xlu0 2
  %523 = vperm.xlu0 %522, %v505
  %v524 = vpop.permute.xlu0 %523
  %527 = vset.pattern.permute.xlu0 2
  %528 = vperm.xlu0 %527, %v506
  %v529 = vpop.permute.xlu0 %528
  %v531 = vsel %vm510, %v514, 0.0
  %v532 = vsel %vm510, %v519, 0.0
  %v533 = vsel %vm510, %v524, 0.0
  %v534 = vsel %vm510, %v529, 0.0
  %v535 = vsel %vm509, %v230, %v531
  %v536 = vsel %vm509, %v233, %v532
  %v537 = vsel %vm509, %v238, %v533
  %v538 = vsel %vm509, %v241, %v534
  %v539 = vsel %vm508, %v123, %v535
  %v540 = vsel %vm508, %v126, %v536
  %v541 = vsel %vm508, %v131, %v537
  %v542 = vsel %vm508, %v134, %v538
  %v543 = vsel %vm507, %v420, %v539
  %v544 = vsel %vm507, %v422, %v540
  %v545 = vsel %vm507, %v424, %v541
  %v546 = vsel %vm507, %v426, %v542
  %547 = vst [vmem:[%s4] sm:$0xff] %v543
  %548 = vst [vmem:[%s4 + $0x8] sm:$0xff] %v544
  %549 = vst [vmem:[%s4 + $0x10] sm:$0xff] %v545
  %550 = vst [vmem:[%s4 + $0x18] sm:$0xff] %v546
  // Predicated region
  $region18: #{monodetr_forward.3} parent=0 // pred_check
    _
  $region19: #{monodetr_forward.3} parent=0 // pred_check_branch
    %552 = sbr.rel (0) target = $region21
  $region20: #{monodetr_forward.3} parent=0 // pred_region
    _
  $region21: #{monodetr_forward.3} parent=0 // pred_fallthru
    _
  // Predicated region
  $region22: #{monodetr_forward.3} parent=0 // pred_check
    _
  $region23: #{monodetr_forward.3} parent=0 // pred_check_branch
    %554 = sbr.rel (0) target = $region25
  $region24: #{monodetr_forward.3} parent=0 // pred_region
    _
  $region25: #{monodetr_forward.3} parent=0 // pred_fallthru
    _

</llo_original>
